<compile_context>
chip_gen: v5e
topology: v5e:2x2
jax: 0.10.0
libtpu: 0.0.40
codegen_flags: <defaults>
</compile_context>

<pallas_src>
import functools

import jax
import jax.numpy as jnp
from jax import lax
from jax.experimental import pallas as pl
from jax.experimental.pallas import tpu as pltpu


# ----------------------------------------------------------------------------
# small helpers
# ----------------------------------------------------------------------------
def _round_up(n, m):
    return ((n + m - 1) // m) * m


def _pad2(a, rows, cols):
    return jnp.pad(a, ((0, rows - a.shape[0]), (0, cols - a.shape[1])))


def _pick_tile(n, candidates):
    for c in candidates:
        if n % c == 0:
            return c
    return n


def _as_rows(a):
    """Flatten to a lane-dense 2-D (rows, lanes) view for streamed reductions."""
    total = a.size
    for lane in (4096, 2048, 1024, 512, 256, 128):
        if total % lane == 0:
            return a.reshape(total // lane, lane)
    return a.reshape(1, total)


# ----------------------------------------------------------------------------
# Fused encoder -> VQ -> decoder kernel
# ----------------------------------------------------------------------------
def _fused_kernel(p_ref, w1_ref, b1_ref, w2_ref, b2_ref, cb_ref, e2_ref,
                  edec_ref, bdec_ref,
                  y_ref, enc_ref, idx_ref, ppl_ref,
                  colsum_ref, *, k_pad, inv_rows):
    i = pl.program_id(0)

    @pl.when(i == 0)
    def _init():
        colsum_ref[...] = jnp.zeros_like(colsum_ref)

    # encoder layer 1: 4x4 stride-2 conv as im2col matmul + bias + ReLU
    h = jnp.dot(p_ref[...], w1_ref[...], preferred_element_type=jnp.float32)
    h = jnp.maximum(h + b1_ref[...], 0.0)

    # encoder layer 2: 1x1 conv
    z = jnp.dot(h.astype(jnp.bfloat16), w2_ref[...],
                preferred_element_type=jnp.float32) + b2_ref[...]

    # VQ nearest neighbour: argmin_k ||z - e_k||^2 (||z||^2 is row-constant)
    ze = lax.dot_general(z.astype(jnp.bfloat16), cb_ref[...],
                         (((1,), (1,)), ((), ())),
                         preferred_element_type=jnp.float32)          # (TM, Kp)
    d = e2_ref[...] - 2.0 * ze                                        # (TM, Kp)
    min_d = jnp.min(d, axis=1, keepdims=True)
    col = lax.broadcasted_iota(jnp.int32, d.shape, 1)
    # first index attaining the minimum (matches torch.argmin tie-break).
    # NOTE: if a row is all-NaN the sentinel k_pad survives -> all-zero
    # one-hot (same behaviour as the previous version); acceptable here.
    idx = jnp.min(jnp.where(d <= min_d, col, jnp.int32(k_pad)),
                  axis=1, keepdims=True)
    onehot = (col == idx).astype(jnp.float32)                         # (TM, Kp)

    # decoder (ConvTranspose2d k=2 s=2) folded into the codebook:
    # y = onehot @ (codebook @ dec_w) + dec_b
    y = jnp.dot(onehot.astype(jnp.bfloat16), edec_ref[...],
                preferred_element_type=jnp.float32) + bdec_ref[...]

    y_ref[...] = y.astype(y_ref.dtype)
    enc_ref[...] = onehot
    idx_ref[...] = idx

    # perplexity: accumulate one-hot column sums across tiles, finalize last.
    colsum_ref[...] += jnp.sum(onehot, axis=0, keepdims=True)

    @pl.when(i == pl.num_programs(0) - 1)
    def _finalize():
        avg = colsum_ref[...] * inv_rows
        ppl_ref[...] = jnp.exp(-jnp.sum(avg * jnp.log(avg + 1e-10),
                                        keepdims=True))


def fused_encode_vq_decode(patches, prep):
    M, K1 = patches.shape
    Kp, Dp = prep["cb"].shape
    Dh_p = prep["w1"].shape[1]
    C4 = prep["e_dec"].shape[1]

    TM = _pick_tile(M, (1024, 512, 256, 128, 64, 32, 16, 8))
    grid = (M // TM,)

    kern = functools.partial(_fused_kernel, k_pad=Kp, inv_rows=1.0 / M)

    return pl.pallas_call(
        kern,
        out_shape=(
            jax.ShapeDtypeStruct((M, C4), jnp.float32),   # decoder pre-shuffle
            jax.ShapeDtypeStruct((M, Kp), jnp.float32),   # one-hot (padded K)
            jax.ShapeDtypeStruct((M, 1), jnp.int32),      # e_indices
            jax.ShapeDtypeStruct((1, 1), jnp.float32),    # perplexity
        ),
        grid=grid,
        in_specs=[
            pl.BlockSpec((TM, K1), lambda i: (i, 0)),      # patches (tiled rows)
            pl.BlockSpec((K1, Dh_p), lambda i: (0, 0)),    # w1 (resident)
            pl.BlockSpec((1, Dh_p), lambda i: (0, 0)),     # b1
            pl.BlockSpec((Dh_p, Dp), lambda i: (0, 0)),    # w2
            pl.BlockSpec((1, Dp), lambda i: (0, 0)),       # b2
            pl.BlockSpec((Kp, Dp), lambda i: (0, 0)),      # codebook (padded)
            pl.BlockSpec((1, Kp), lambda i: (0, 0)),       # ||e||^2 (precomputed)
            pl.BlockSpec((Kp, C4), lambda i: (0, 0)),      # codebook @ dec_w
            pl.BlockSpec((1, C4), lambda i: (0, 0)),       # dec bias
        ],
        out_specs=(
            pl.BlockSpec((TM, C4), lambda i: (i, 0)),
            pl.BlockSpec((TM, Kp), lambda i: (i, 0)),
            pl.BlockSpec((TM, 1), lambda i: (i, 0)),
            pl.BlockSpec((1, 1), lambda i: (0, 0)),
        ),
        scratch_shapes=[pltpu.VMEM((1, Kp), jnp.float32)],
        compiler_params=pltpu.CompilerParams(
            # "arbitrary": sequential so the perplexity scratch accumulation
            # across tiles stays correct (a parallel axis would shard it).
            dimension_semantics=("arbitrary",),
            vmem_limit_bytes=32 * 1024 * 1024),
    )(patches, prep["w1"], prep["b1"], prep["w2"], prep["b2"],
      prep["cb"], prep["e2"], prep["e_dec"], prep["b_dec"])


# ----------------------------------------------------------------------------
# Streamed MSE reduction kernel
# ----------------------------------------------------------------------------
def _mse_kernel(a_ref, b_ref, o_ref, acc_ref, *, inv_n):
    @pl.when(pl.program_id(0) == 0)
    def _init():
        acc_ref[...] = jnp.zeros_like(acc_ref)

    d = a_ref[...].astype(jnp.float32) - b_ref[...].astype(jnp.float32)
    acc_ref[...] += jnp.sum(d * d, keepdims=True)

    @pl.when(pl.program_id(0) == pl.num_programs(0) - 1)
    def _finalize():
        o_ref[...] = acc_ref[...] * inv_n


def mse_pallas(a, b):
    a2 = _as_rows(a)
    b2 = b.reshape(a2.shape)
    R, L = a2.shape
    max_rows = max(8, (2 * 1024 * 1024) // (4 * L))   # ~2 MiB per input block
    cand = tuple(c for c in (512, 256, 128, 64, 32, 16, 8) if c <= max_rows)
    TR = _pick_tile(R, cand)
    inv_n = 1.0 / (R * L)
    out = pl.pallas_call(
        functools.partial(_mse_kernel, inv_n=inv_n),
        out_shape=jax.ShapeDtypeStruct((1, 1), jnp.float32),
        grid=(R // TR,),
        in_specs=[pl.BlockSpec((TR, L), lambda i: (i, 0)),
                  pl.BlockSpec((TR, L), lambda i: (i, 0))],
        out_specs=pl.BlockSpec((1, 1), lambda i: (0, 0)),
        scratch_shapes=[pltpu.VMEM((1, 1), jnp.float32)],
        compiler_params=pltpu.CompilerParams(
            dimension_semantics=("arbitrary",),
            vmem_limit_bytes=32 * 1024 * 1024),
    )(a2, b2)
    return out[0, 0]


# ----------------------------------------------------------------------------
# Glue (im2col, parameter folding) — plain JAX, fused by XLA under jit
# ----------------------------------------------------------------------------
def im2col_4x4_s2_nhwc(x_nhwc):
    """(B, H, W, C) -> (B*H/2*W/2, 16*C) patches of the 4x4 / stride-2 / pad-1 conv."""
    B, H, W, C = x_nhwc.shape
    H2, W2 = H // 2, W // 2
    xp = jnp.pad(x_nhwc, ((0, 0), (1, 1), (1, 1), (0, 0)))
    cols = []
    for di in range(4):
        for dj in range(4):
            cols.append(xp[:, di:di + 2 * H2:2, dj:dj + 2 * W2:2, :])
    patches = jnp.concatenate(cols, axis=-1)              # (B, H2, W2, 16*C)
    return patches.reshape(B * H2 * W2, 16 * C), (B, H2, W2)


def prepare_inference_params(p):
    """Fold / pad / cast parameters once: lane dims -> multiples of 128,
    matmul operands -> bf16, precompute ||e||^2 and e_dec = codebook @ dec_w."""
    K1, Dh = p["enc_w1"].shape
    _, D = p["enc_w2"].shape
    K, _ = p["codebook"].shape
    _, C4 = p["dec_w"].shape
    Dh_p, D_p, K_p = _round_up(Dh, 128), _round_up(D, 128), _round_up(K, 128)

    cb = _pad2(p["codebook"], K_p, D_p).astype(jnp.bfloat16)
    e2 = jnp.sum(cb.astype(jnp.float32) ** 2, axis=1)[None, :]        # (1, Kp)
    valid = (jnp.arange(K_p) < K)[None, :]
    e2 = jnp.where(valid, e2, jnp.float32(1e30))   # padded codes never win argmin

    e_dec = _pad2(p["codebook"] @ p["dec_w"], K_p, C4).astype(jnp.bfloat16)

    return dict(
        w1=_pad2(p["enc_w1"], K1, Dh_p).astype(jnp.bfloat16),
        b1=jnp.pad(p["enc_b1"], (0, Dh_p - Dh))[None, :].astype(jnp.float32),
        w2=_pad2(p["enc_w2"], Dh_p, D_p).astype(jnp.bfloat16),
        b2=jnp.pad(p["enc_b2"], (0, D_p - D))[None, :].astype(jnp.float32),
        cb=cb, e2=e2, e_dec=e_dec,
        b_dec=p["dec_b"][None, :].astype(jnp.float32),
    )


@jax.jit
def vqwae_forward(x, params):
    """Inference branch of VQWAE.forward (flg_train=False)."""
    B, C, H, W = x.shape
    H2, W2 = H // 2, W // 2
    K = params["codebook"].shape[0]

    prep = prepare_inference_params(params)

    # single NCHW -> NHWC transpose at the public boundary; everything
    # downstream is rows-of-pixels x channels (lane axis = channels / codes).
    x_nhwc = jnp.transpose(x, (0, 2, 3, 1))
    patches, _ = im2col_4x4_s2_nhwc(x_nhwc)
    patches = patches.astype(jnp.bfloat16)

    y, enc_p, idx, ppl = fused_encode_vq_decode(patches, prep)

    # ConvTranspose2d(k=2, s=2) == depth-to-space of the fused matmul output.
    x_rec_nhwc = (y.reshape(B, H2, W2, 2, 2, C)
                    .transpose(0, 1, 3, 2, 4, 5)
                    .reshape(B, H, W, C))

    mse = mse_pallas(x_rec_nhwc, x_nhwc)

    x_reconst = jnp.transpose(x_rec_nhwc, (0, 3, 1, 2))   # back to NCHW
    min_encodings = enc_p[:, :K]                           # drop K padding
    e_indices = idx[:, 0]
    loss = dict(all=mse, mse=mse, perplexity=ppl[0, 0])
    return x_reconst, min_encodings, e_indices, loss


def init_params(key, in_ch, dim_dict, size_dict):
    ks = jax.random.split(key, 4)
    std = 0.02  # weights_init: conv weights ~ N(0, 0.02)
    return {
        "enc_w1": std * jax.random.normal(ks[0], (in_ch * 16, dim_dict), jnp.float32),
        "enc_b1": jnp.zeros((dim_dict,), jnp.float32),
        "enc_w2": std * jax.random.normal(ks[1], (dim_dict, dim_dict), jnp.float32),
        "enc_b2": jnp.zeros((dim_dict,), jnp.float32),
        "dec_w": std * jax.random.normal(ks[2], (dim_dict, in_ch * 4), jnp.float32),
        "dec_b": jnp.zeros((in_ch * 4,), jnp.float32),
        # self.codebook = nn.Parameter(torch.randn(size_dict, dim_dict))
        "codebook": jax.random.normal(ks[3], (size_dict, dim_dict), jnp.float32),
    }


if __name__ == "__main__":
    key = jax.random.PRNGKey(0)
    kx, kp = jax.random.split(key)

    B, C, H, W = 2, 4, 16, 16       # small NCHW input
    dim_dict, size_dict = 32, 64    # codebook: 64 codes of dim 32

    x = jax.random.normal(kx, (B, C, H, W), jnp.float32)
    params = init_params(kp, C, dim_dict, size_dict)

    x_reconst, min_encodings, e_indices, loss = vqwae_forward(x, params)
    jax.block_until_ready((x_reconst, min_encodings, e_indices, loss))

    assert x_reconst.shape == (B, C, H, W)
    assert min_encodings.shape == (B * (H // 2) * (W // 2), size_dict)
    assert e_indices.shape == (B * (H // 2) * (W // 2),)
    print("KERNEL_OK")
</pallas_src>

<mosaic_0001>
module attributes {stable_mosaic.version = 11 : i64} {
  func.func @_fused_kernel(%arg0: i32, %arg1: memref<128x64xbf16, #tpu.memory_space<vmem>>, %arg2: memref<64x128xbf16, #tpu.memory_space<vmem>>, %arg3: memref<1x128xf32, #tpu.memory_space<vmem>>, %arg4: memref<128x128xbf16, #tpu.memory_space<vmem>>, %arg5: memref<1x128xf32, #tpu.memory_space<vmem>>, %arg6: memref<128x128xbf16, #tpu.memory_space<vmem>>, %arg7: memref<1x128xf32, #tpu.memory_space<vmem>>, %arg8: memref<128x16xbf16, #tpu.memory_space<vmem>>, %arg9: memref<1x16xf32, #tpu.memory_space<vmem>>, %arg10: memref<128x16xf32, #tpu.memory_space<vmem>>, %arg11: memref<128x128xf32, #tpu.memory_space<vmem>>, %arg12: memref<128x1xi32, #tpu.memory_space<vmem>>, %arg13: memref<1x1xf32, #tpu.memory_space<vmem>>, %arg14: memref<1x128xf32, #tpu.memory_space<vmem>>) attributes {dimension_semantics = [#tpu.dimension_semantics<arbitrary>], iteration_bounds = array<i64: 1>, scalar_prefetch = 0 : i64, scratch_operands = 1 : i64, tpu.core_type = #tpu.core_type<tc>, window_params = [{transform_indices = @transform_0, window_bounds = array<i64: 128, 64>}, {pipeline_mode = #tpu.pipeline_mode<synchronous>, transform_indices = @transform_1, window_bounds = array<i64: 64, 128>}, {pipeline_mode = #tpu.pipeline_mode<synchronous>, transform_indices = @transform_2, window_bounds = array<i64: 1, 128>}, {pipeline_mode = #tpu.pipeline_mode<synchronous>, transform_indices = @transform_3, window_bounds = array<i64: 128, 128>}, {pipeline_mode = #tpu.pipeline_mode<synchronous>, transform_indices = @transform_4, window_bounds = array<i64: 1, 128>}, {pipeline_mode = #tpu.pipeline_mode<synchronous>, transform_indices = @transform_5, window_bounds = array<i64: 128, 128>}, {pipeline_mode = #tpu.pipeline_mode<synchronous>, transform_indices = @transform_6, window_bounds = array<i64: 1, 128>}, {pipeline_mode = #tpu.pipeline_mode<synchronous>, transform_indices = @transform_7, window_bounds = array<i64: 128, 16>}, {pipeline_mode = #tpu.pipeline_mode<synchronous>, transform_indices = @transform_8, window_bounds = array<i64: 1, 16>}, {transform_indices = @transform_9, window_bounds = array<i64: 128, 16>}, {transform_indices = @transform_10, window_bounds = array<i64: 128, 128>}, {transform_indices = @transform_11, window_bounds = array<i64: 128, 1>}, {pipeline_mode = #tpu.pipeline_mode<synchronous>, transform_indices = @transform_12, window_bounds = array<i64: 1, 1>}]} {
    %c0_i32 = arith.constant 0 : i32
    %0 = arith.cmpi eq, %arg0, %c0_i32 : i32
    %1 = arith.extui %0 : i1 to i32
    %c0_i32_0 = arith.constant 0 : i32
    %2 = arith.cmpi ne, %1, %c0_i32_0 : i32
    scf.if %2 {
      %cst_38 = arith.constant 0.000000e+00 : f32
      %55 = vector.broadcast %cst_38 : f32 to vector<1x128xf32>
      %c0_39 = arith.constant 0 : index
      %c0_40 = arith.constant 0 : index
      %56 = vector.load %arg14[%c0_39, %c0_40] : memref<1x128xf32, #tpu.memory_space<vmem>>, vector<1x128xf32>
      tpu.vector_store %arg14[%c0_39, %c0_40], %55 {strides = array<i32>} : memref<1x128xf32, #tpu.memory_space<vmem>>, vector<1x128xf32>,
    } else {
    }
    %c0 = arith.constant 0 : index
    %c0_1 = arith.constant 0 : index
    %3 = vector.load %arg1[%c0, %c0_1] : memref<128x64xbf16, #tpu.memory_space<vmem>>, vector<128x64xbf16>
    %c0_2 = arith.constant 0 : index
    %c0_3 = arith.constant 0 : index
    %4 = vector.load %arg2[%c0_2, %c0_3] : memref<64x128xbf16, #tpu.memory_space<vmem>>, vector<64x128xbf16>
    %cst = arith.constant dense<0.000000e+00> : vector<128x128xf32>
    %5 = tpu.matmul %3, %4, %cst {dimension_numbers = #tpu.dot_dimension_numbers<[1], [0], [0], [1], [0, 0, 1, 1], [], []>} : vector<128x64xbf16>, vector<64x128xbf16>, vector<128x128xf32> -> vector<128x128xf32>
    %c0_4 = arith.constant 0 : index
    %c0_5 = arith.constant 0 : index
    %6 = vector.load %arg3[%c0_4, %c0_5] : memref<1x128xf32, #tpu.memory_space<vmem>>, vector<1x128xf32>
    %7 = vector.broadcast %6 : vector<1x128xf32> to vector<128x128xf32>
    %8 = arith.addf %5, %7 : vector<128x128xf32>
    %cst_6 = arith.constant 0.000000e+00 : f32
    %9 = vector.broadcast %cst_6 : f32 to vector<128x128xf32>
    %10 = arith.maximumf %8, %9 : vector<128x128xf32>
    %11 = arith.truncf %10 : vector<128x128xf32> to vector<128x128xbf16>
    %c0_7 = arith.constant 0 : index
    %c0_8 = arith.constant 0 : index
    %12 = vector.load %arg4[%c0_7, %c0_8] : memref<128x128xbf16, #tpu.memory_space<vmem>>, vector<128x128xbf16>
    %cst_9 = arith.constant dense<0.000000e+00> : vector<128x128xf32>
    %13 = tpu.matmul %11, %12, %cst_9 {dimension_numbers = #tpu.dot_dimension_numbers<[1], [0], [0], [1], [0, 0, 1, 1], [], []>} : vector<128x128xbf16>, vector<128x128xbf16>, vector<128x128xf32> -> vector<128x128xf32>
    %c0_10 = arith.constant 0 : index
    %c0_11 = arith.constant 0 : index
    %14 = vector.load %arg5[%c0_10, %c0_11] : memref<1x128xf32, #tpu.memory_space<vmem>>, vector<1x128xf32>
    %15 = vector.broadcast %14 : vector<1x128xf32> to vector<128x128xf32>
    %16 = arith.addf %13, %15 : vector<128x128xf32>
    %17 = arith.truncf %16 : vector<128x128xf32> to vector<128x128xbf16>
    %c0_12 = arith.constant 0 : index
    %c0_13 = arith.constant 0 : index
    %18 = vector.load %arg6[%c0_12, %c0_13] : memref<128x128xbf16, #tpu.memory_space<vmem>>, vector<128x128xbf16>
    %cst_14 = arith.constant dense<0.000000e+00> : vector<128x128xf32>
    %19 = tpu.matmul %17, %18, %cst_14 {dimension_numbers = #tpu.dot_dimension_numbers<[1], [1], [0], [0], [0, 0, 1, 0], [], []>} : vector<128x128xbf16>, vector<128x128xbf16>, vector<128x128xf32> -> vector<128x128xf32>
    %c0_15 = arith.constant 0 : index
    %c0_16 = arith.constant 0 : index
    %20 = vector.load %arg7[%c0_15, %c0_16] : memref<1x128xf32, #tpu.memory_space<vmem>>, vector<1x128xf32>
    %cst_17 = arith.constant 2.000000e+00 : f32
    %21 = vector.broadcast %cst_17 : f32 to vector<128x128xf32>
    %22 = arith.mulf %21, %19 : vector<128x128xf32>
    %23 = vector.broadcast %20 : vector<1x128xf32> to vector<128x128xf32>
    %24 = arith.subf %23, %22 : vector<128x128xf32>
    %cst_18 = arith.constant dense<0x7F800000> : vector<128xf32>
    %25 = vector.multi_reduction <minimumf>, %24, %cst_18 [1] : vector<128x128xf32> to vector<128xf32>
    %26 = vector.shape_cast %25 : vector<128xf32> to vector<128x1xf32>
    %27 = tpu.iota {dimensions = array<i32: 1>} : vector<128x128xi32>
    %28 = vector.broadcast %26 : vector<128x1xf32> to vector<128x128xf32>
    %29 = arith.cmpf ole, %24, %28 : vector<128x128xf32>
    %c128_i32 = arith.constant 128 : i32
    %30 = vector.broadcast %c128_i32 : i32 to vector<128x128xi32>
    %31 = arith.select %29, %27, %30 : vector<128x128xi1>, vector<128x128xi32>
    %cst_19 = arith.constant dense<2147483647> : vector<128xi32>
    %32 = vector.multi_reduction <minsi>, %31, %cst_19 [1] : vector<128x128xi32> to vector<128xi32>
    %33 = vector.shape_cast %32 : vector<128xi32> to vector<128x1xi32>
    %34 = vector.broadcast %33 : vector<128x1xi32> to vector<128x128xi32>
    %35 = arith.cmpi eq, %27, %34 : vector<128x128xi32>
    %36 = arith.extui %35 : vector<128x128xi1> to vector<128x128xi32>
    %37 = arith.sitofp %36 : vector<128x128xi32> to vector<128x128xf32>
    %38 = arith.truncf %37 : vector<128x128xf32> to vector<128x128xbf16>
    %c0_20 = arith.constant 0 : index
    %c0_21 = arith.constant 0 : index
    %39 = vector.load %arg8[%c0_20, %c0_21] : memref<128x16xbf16, #tpu.memory_space<vmem>>, vector<128x16xbf16>
    %cst_22 = arith.constant dense<0.000000e+00> : vector<128x16xf32>
    %40 = tpu.matmul %38, %39, %cst_22 {dimension_numbers = #tpu.dot_dimension_numbers<[1], [0], [0], [1], [0, 0, 1, 1], [], []>} : vector<128x128xbf16>, vector<128x16xbf16>, vector<128x16xf32> -> vector<128x16xf32>
    %c0_23 = arith.constant 0 : index
    %c0_24 = arith.constant 0 : index
    %41 = vector.load %arg9[%c0_23, %c0_24] : memref<1x16xf32, #tpu.memory_space<vmem>>, vector<1x16xf32>
    %42 = vector.broadcast %41 : vector<1x16xf32> to vector<128x16xf32>
    %43 = arith.addf %40, %42 : vector<128x16xf32>
    %c0_25 = arith.constant 0 : index
    %c0_26 = arith.constant 0 : index
    %44 = vector.load %arg10[%c0_25, %c0_26] : memref<128x16xf32, #tpu.memory_space<vmem>>, vector<128x16xf32>
    tpu.vector_store %arg10[%c0_25, %c0_26], %43 {strides = array<i32>} : memref<128x16xf32, #tpu.memory_space<vmem>>, vector<128x16xf32>,
    %c0_27 = arith.constant 0 : index
    %c0_28 = arith.constant 0 : index
    %45 = vector.load %arg11[%c0_27, %c0_28] : memref<128x128xf32, #tpu.memory_space<vmem>>, vector<128x128xf32>
    tpu.vector_store %arg11[%c0_27, %c0_28], %37 {strides = array<i32>} : memref<128x128xf32, #tpu.memory_space<vmem>>, vector<128x128xf32>,
    %c0_29 = arith.constant 0 : index
    %c0_30 = arith.constant 0 : index
    %46 = vector.load %arg12[%c0_29, %c0_30] : memref<128x1xi32, #tpu.memory_space<vmem>>, vector<128x1xi32>
    tpu.vector_store %arg12[%c0_29, %c0_30], %33 {strides = array<i32>} : memref<128x1xi32, #tpu.memory_space<vmem>>, vector<128x1xi32>,
    %c0_31 = arith.constant 0 : index
    %c0_32 = arith.constant 0 : index
    %47 = vector.load %arg14[%c0_31, %c0_32] : memref<1x128xf32, #tpu.memory_space<vmem>>, vector<1x128xf32>
    %cst_33 = arith.constant dense<0.000000e+00> : vector<128xf32>
    %48 = vector.multi_reduction <add>, %37, %cst_33 [0] : vector<128x128xf32> to vector<128xf32>
    %49 = vector.shape_cast %48 : vector<128xf32> to vector<1x128xf32>
    %50 = arith.addf %47, %49 : vector<1x128xf32>
    %c0_34 = arith.constant 0 : index
    %c0_35 = arith.constant 0 : index
    %51 = vector.load %arg14[%c0_34, %c0_35] : memref<1x128xf32, #tpu.memory_space<vmem>>, vector<1x128xf32>
    tpu.vector_store %arg14[%c0_34, %c0_35], %50 {strides = array<i32>} : memref<1x128xf32, #tpu.memory_space<vmem>>, vector<1x128xf32>,
    %c0_i32_36 = arith.constant 0 : i32
    %52 = arith.cmpi eq, %arg0, %c0_i32_36 : i32
    %53 = arith.extui %52 : i1 to i32
    %c0_i32_37 = arith.constant 0 : i32
    %54 = arith.cmpi ne, %53, %c0_i32_37 : i32
    scf.if %54 {
      %c0_38 = arith.constant 0 : index
      %c0_39 = arith.constant 0 : index
      %55 = vector.load %arg14[%c0_38, %c0_39] : memref<1x128xf32, #tpu.memory_space<vmem>>, vector<1x128xf32>
      %cst_40 = arith.constant 7.812500e-03 : f32
      %56 = vector.broadcast %cst_40 : f32 to vector<1x128xf32>
      %57 = arith.mulf %55, %56 : vector<1x128xf32>
      %cst_41 = arith.constant 1.000000e-10 : f32
      %58 = vector.broadcast %cst_41 : f32 to vector<1x128xf32>
      %59 = arith.addf %57, %58 : vector<1x128xf32>
      %60 = math.log %59 : vector<1x128xf32>
      %61 = arith.mulf %57, %60 : vector<1x128xf32>
      %62 = vector.shape_cast %61 : vector<1x128xf32> to vector<1x1x128xf32>
      %cst_42 = arith.constant dense<0.000000e+00> : vector<1xf32>
      %63 = vector.multi_reduction <add>, %62, %cst_42 [1, 2] : vector<1x1x128xf32> to vector<1xf32>
      %64 = vector.shape_cast %63 : vector<1xf32> to vector<1x1x1xf32>
      %65 = vector.extract %64[0, 0, 0] : f32 from vector<1x1x1xf32>
      %66 = vector.broadcast %65 : f32 to vector<1x1xf32>
      %cst_43 = arith.constant 0.000000e+00 : f32
      %67 = vector.broadcast %cst_43 : f32 to vector<1x1xf32>
      %68 = arith.subf %67, %66 : vector<1x1xf32>
      %69 = math.exp %68 : vector<1x1xf32>
      %c0_44 = arith.constant 0 : index
      %c0_45 = arith.constant 0 : index
      %70 = vector.load %arg13[%c0_44, %c0_45] : memref<1x1xf32, #tpu.memory_space<vmem>>, vector<1x1xf32>
      tpu.vector_store %arg13[%c0_44, %c0_45], %69 {strides = array<i32>} : memref<1x1xf32, #tpu.memory_space<vmem>>, vector<1x1xf32>,
    } else {
    }
    return
  }
  func.func @transform_0(%arg0: i32) -> (i32, i32) {
    %c0_i32 = arith.constant 0 : i32
    %c0_i32_0 = arith.constant 0 : i32
    return %arg0, %c0_i32 : i32, i32
  }
  func.func @transform_1(%arg0: i32) -> (i32, i32) {
    %c0_i32 = arith.constant 0 : i32
    %c0_i32_0 = arith.constant 0 : i32
    %c0_i32_1 = arith.constant 0 : i32
    return %c0_i32, %c0_i32_0 : i32, i32
  }
  func.func @transform_2(%arg0: i32) -> (i32, i32) {
    %c0_i32 = arith.constant 0 : i32
    %c0_i32_0 = arith.constant 0 : i32
    %c0_i32_1 = arith.constant 0 : i32
    return %c0_i32, %c0_i32_0 : i32, i32
  }
  func.func @transform_3(%arg0: i32) -> (i32, i32) {
    %c0_i32 = arith.constant 0 : i32
    %c0_i32_0 = arith.constant 0 : i32
    %c0_i32_1 = arith.constant 0 : i32
    return %c0_i32, %c0_i32_0 : i32, i32
  }
  func.func @transform_4(%arg0: i32) -> (i32, i32) {
    %c0_i32 = arith.constant 0 : i32
    %c0_i32_0 = arith.constant 0 : i32
    %c0_i32_1 = arith.constant 0 : i32
    return %c0_i32, %c0_i32_0 : i32, i32
  }
  func.func @transform_5(%arg0: i32) -> (i32, i32) {
    %c0_i32 = arith.constant 0 : i32
    %c0_i32_0 = arith.constant 0 : i32
    %c0_i32_1 = arith.constant 0 : i32
    return %c0_i32, %c0_i32_0 : i32, i32
  }
  func.func @transform_6(%arg0: i32) -> (i32, i32) {
    %c0_i32 = arith.constant 0 : i32
    %c0_i32_0 = arith.constant 0 : i32
    %c0_i32_1 = arith.constant 0 : i32
    return %c0_i32, %c0_i32_0 : i32, i32
  }
  func.func @transform_7(%arg0: i32) -> (i32, i32) {
    %c0_i32 = arith.constant 0 : i32
    %c0_i32_0 = arith.constant 0 : i32
    %c0_i32_1 = arith.constant 0 : i32
    return %c0_i32, %c0_i32_0 : i32, i32
  }
  func.func @transform_8(%arg0: i32) -> (i32, i32) {
    %c0_i32 = arith.constant 0 : i32
    %c0_i32_0 = arith.constant 0 : i32
    %c0_i32_1 = arith.constant 0 : i32
    return %c0_i32, %c0_i32_0 : i32, i32
  }
  func.func @transform_9(%arg0: i32) -> (i32, i32) {
    %c0_i32 = arith.constant 0 : i32
    %c0_i32_0 = arith.constant 0 : i32
    return %arg0, %c0_i32 : i32, i32
  }
  func.func @transform_10(%arg0: i32) -> (i32, i32) {
    %c0_i32 = arith.constant 0 : i32
    %c0_i32_0 = arith.constant 0 : i32
    return %arg0, %c0_i32 : i32, i32
  }
  func.func @transform_11(%arg0: i32) -> (i32, i32) {
    %c0_i32 = arith.constant 0 : i32
    %c0_i32_0 = arith.constant 0 : i32
    return %arg0, %c0_i32 : i32, i32
  }
  func.func @transform_12(%arg0: i32) -> (i32, i32) {
    %c0_i32 = arith.constant 0 : i32
    %c0_i32_0 = arith.constant 0 : i32
    %c0_i32_1 = arith.constant 0 : i32
    return %c0_i32, %c0_i32_0 : i32, i32
  }
}

module attributes {stable_mosaic.version = 11 : i64} {
  func.func @_mse_kernel(%arg0: i32, %arg1: memref<1x2048xf32, #tpu.memory_space<vmem>>, %arg2: memref<1x2048xf32, #tpu.memory_space<vmem>>, %arg3: memref<1x1xf32, #tpu.memory_space<vmem>>, %arg4: memref<1x1xf32, #tpu.memory_space<vmem>>) attributes {dimension_semantics = [#tpu.dimension_semantics<arbitrary>], iteration_bounds = array<i64: 1>, scalar_prefetch = 0 : i64, scratch_operands = 1 : i64, tpu.core_type = #tpu.core_type<tc>, window_params = [{transform_indices = @transform_0, window_bounds = array<i64: 1, 2048>}, {transform_indices = @transform_1, window_bounds = array<i64: 1, 2048>}, {pipeline_mode = #tpu.pipeline_mode<synchronous>, transform_indices = @transform_2, window_bounds = array<i64: 1, 1>}]} {
    %c0_i32 = arith.constant 0 : i32
    %0 = arith.cmpi eq, %arg0, %c0_i32 : i32
    %1 = arith.extui %0 : i1 to i32
    %c0_i32_0 = arith.constant 0 : i32
    %2 = arith.cmpi ne, %1, %c0_i32_0 : i32
    scf.if %2 {
      %cst_10 = arith.constant 0.000000e+00 : f32
      %18 = vector.broadcast %cst_10 : f32 to vector<1x1xf32>
      %c0_11 = arith.constant 0 : index
      %c0_12 = arith.constant 0 : index
      %19 = vector.load %arg4[%c0_11, %c0_12] : memref<1x1xf32, #tpu.memory_space<vmem>>, vector<1x1xf32>
      tpu.vector_store %arg4[%c0_11, %c0_12], %18 {strides = array<i32>} : memref<1x1xf32, #tpu.memory_space<vmem>>, vector<1x1xf32>,
    } else {
    }
    %c0 = arith.constant 0 : index
    %c0_1 = arith.constant 0 : index
    %3 = vector.load %arg1[%c0, %c0_1] : memref<1x2048xf32, #tpu.memory_space<vmem>>, vector<1x2048xf32>
    %c0_2 = arith.constant 0 : index
    %c0_3 = arith.constant 0 : index
    %4 = vector.load %arg2[%c0_2, %c0_3] : memref<1x2048xf32, #tpu.memory_space<vmem>>, vector<1x2048xf32>
    %5 = arith.subf %3, %4 : vector<1x2048xf32>
    %c0_4 = arith.constant 0 : index
    %c0_5 = arith.constant 0 : index
    %6 = vector.load %arg4[%c0_4, %c0_5] : memref<1x1xf32, #tpu.memory_space<vmem>>, vector<1x1xf32>
    %7 = arith.mulf %5, %5 : vector<1x2048xf32>
    %8 = vector.shape_cast %7 : vector<1x2048xf32> to vector<1x1x2048xf32>
    %cst = arith.constant dense<0.000000e+00> : vector<1xf32>
    %9 = vector.multi_reduction <add>, %8, %cst [1, 2] : vector<1x1x2048xf32> to vector<1xf32>
    %10 = vector.shape_cast %9 : vector<1xf32> to vector<1x1x1xf32>
    %11 = vector.extract %10[0, 0, 0] : f32 from vector<1x1x1xf32>
    %12 = vector.broadcast %11 : f32 to vector<1x1xf32>
    %13 = arith.addf %6, %12 : vector<1x1xf32>
    %c0_6 = arith.constant 0 : index
    %c0_7 = arith.constant 0 : index
    %14 = vector.load %arg4[%c0_6, %c0_7] : memref<1x1xf32, #tpu.memory_space<vmem>>, vector<1x1xf32>
    tpu.vector_store %arg4[%c0_6, %c0_7], %13 {strides = array<i32>} : memref<1x1xf32, #tpu.memory_space<vmem>>, vector<1x1xf32>,
    %c0_i32_8 = arith.constant 0 : i32
    %15 = arith.cmpi eq, %arg0, %c0_i32_8 : i32
    %16 = arith.extui %15 : i1 to i32
    %c0_i32_9 = arith.constant 0 : i32
    %17 = arith.cmpi ne, %16, %c0_i32_9 : i32
    scf.if %17 {
      %c0_10 = arith.constant 0 : index
      %c0_11 = arith.constant 0 : index
      %18 = vector.load %arg4[%c0_10, %c0_11] : memref<1x1xf32, #tpu.memory_space<vmem>>, vector<1x1xf32>
      %cst_12 = arith.constant 4.8828125E-4 : f32
      %19 = vector.broadcast %cst_12 : f32 to vector<1x1xf32>
      %20 = arith.mulf %18, %19 : vector<1x1xf32>
      %c0_13 = arith.constant 0 : index
      %c0_14 = arith.constant 0 : index
      %21 = vector.load %arg3[%c0_13, %c0_14] : memref<1x1xf32, #tpu.memory_space<vmem>>, vector<1x1xf32>
      tpu.vector_store %arg3[%c0_13, %c0_14], %20 {strides = array<i32>} : memref<1x1xf32, #tpu.memory_space<vmem>>, vector<1x1xf32>,
    } else {
    }
    return
  }
  func.func @transform_0(%arg0: i32) -> (i32, i32) {
    %c0_i32 = arith.constant 0 : i32
    %c0_i32_0 = arith.constant 0 : i32
    return %arg0, %c0_i32 : i32, i32
  }
  func.func @transform_1(%arg0: i32) -> (i32, i32) {
    %c0_i32 = arith.constant 0 : i32
    %c0_i32_0 = arith.constant 0 : i32
    return %arg0, %c0_i32 : i32, i32
  }
  func.func @transform_2(%arg0: i32) -> (i32, i32) {
    %c0_i32 = arith.constant 0 : i32
    %c0_i32_0 = arith.constant 0 : i32
    %c0_i32_1 = arith.constant 0 : i32
    return %c0_i32, %c0_i32_0 : i32, i32
  }
}

</mosaic_0001>

<llo_original>
// kernel: vqwae_forward.3
$region0: #{vqwae_forward.3}
  #allocation0 [shape = 'u32[]', space=smem, size = 0x4, offset = 0x4, fixed_abs, tag = 'smem constant byte address 0x4 - core index']
  #allocation1 [shape = 'u32[72,128]{1,0:T(1,128)}', space=vmem, size = 0x9000, scoped, tag = 'internal scratch']
  #allocation2 [shape = 'f32[1,1]{1,0:T(1,128)}', space=vmem, size = 0x200, scoped, tag = 'scratch operand']
  %s0 = inlined_call_operand.vmem [shape: f32[1,2048], index: 0, kind: input, shape index: {}]
  %s1 = inlined_call_operand.vmem [shape: f32[1,2048], index: 1, kind: input, shape index: {}]
  %s2 = inlined_call_operand.hbm [shape: f32[1,1], index: 2, kind: output, shape index: {}]
  %s3 = sld [smem:[#allocation0]]
  $region26: #{vqwae_forward.3} parent=0
    _
  %s5 = ssub.s32 1, %s3
  %s6 = scalar_select 0, %s5, %s3
  $region1: #{vqwae_forward.3} parent=0
    #allocation3 [shape = 'u8[512]{0}', space=vmem, size = 0x400, scoped, tag = 'output window, operand 0, single buffered']
    #allocation4 [shape = 's32[1]{0}', space=sflag, size = 0x4, scoped, tag = 'scoped memory for vqwae_forward.3']
    %7 = vsyncpa [#allocation4], 0
    // Predicated region
    $region2: #{vqwae_forward.3} parent=1 // pred_check
      _
    $region3: #{vqwae_forward.3} parent=1 // pred_check_branch
      %9 = sbr.rel (0) target = $region5
    $region4: #{vqwae_forward.3} parent=1 // pred_region
      _
    $region5: #{vqwae_forward.3} parent=1 // pred_fallthru
      _
    // Predicated region
    $region6: #{vqwae_forward.3} parent=1 // pred_check
      _
    $region7: #{vqwae_forward.3} parent=1 // pred_check_branch
      %11 = sbr.rel (0) target = $region9
    $region8: #{vqwae_forward.3} parent=1 // pred_region
      _
    $region9: #{vqwae_forward.3} parent=1 // pred_fallthru
      _
    %p12 = scmp.eq.s32.totalorder 0, 0
    // Predicated region
    $region10: #{vqwae_forward.3} parent=1 // pred_check
      %p13 = pneg %p12
    $region11: #{vqwae_forward.3} parent=1 // pred_check_branch
      %15 = sbr.rel (%p13) target = $region13
    $region12: #{vqwae_forward.3} parent=1 // pred_region
      %vm16 = vcmask 0
      %17 = vst.msk [vmem:[#allocation2] sm:$0x1] %vm16, 0.0
    $region13: #{vqwae_forward.3} parent=1 // pred_fallthru
      _
    %v18 = vld [vmem:[%s0] sm:$0xff]
    %v19 = vld [vmem:[%s0 + $0x8] sm:$0xff]
    %v20 = vld [vmem:[%s1] sm:$0xff]
    %v21 = vld [vmem:[%s1 + $0x8] sm:$0xff]
    %v22 = vsub.f32 %v18, %v20
    %v23 = vsub.f32 %v19, %v21
    %v24 = vld [vmem:[#allocation2] sm:$0x1]
    %v25 = vmul.f32 %v22, %v22
    %v26 = vmul.f32 %v23, %v23
    %v29 = vperm.slane %v25, 0
    %v30 = vperm.slane %v25, 1
    %v31 = vperm.slane %v25, 2
    %v32 = vperm.slane %v25, 3
    %v33 = vperm.slane %v25, 4
    %v34 = vperm.slane %v25, 5
    %v35 = vperm.slane %v25, 6
    %v36 = vperm.slane %v25, 7
    %v37 = vperm.slane %v26, 0
    %v38 = vperm.slane %v26, 1
    %v39 = vperm.slane %v26, 2
    %v40 = vperm.slane %v26, 3
    %v41 = vperm.slane %v26, 4
    %v42 = vperm.slane %v26, 5
    %v43 = vperm.slane %v26, 6
    %v44 = vperm.slane %v26, 7
    %vm61 = vcmask 1040384
    %v62 = vsel %vm61, %v29, 0.0
    %v63 = vsel %vm61, %v30, 0.0
    %v64 = vadd.f32 %v62, %v63
    %v65 = vsel %vm61, %v31, 0.0
    %v66 = vadd.f32 %v64, %v65
    %v67 = vsel %vm61, %v32, 0.0
    %v68 = vadd.f32 %v66, %v67
    %v69 = vsel %vm61, %v33, 0.0
    %v70 = vadd.f32 %v68, %v69
    %v71 = vsel %vm61, %v34, 0.0
    %v72 = vadd.f32 %v70, %v71
    %v73 = vsel %vm61, %v35, 0.0
    %v74 = vadd.f32 %v72, %v73
    %v75 = vsel %vm61, %v36, 0.0
    %v76 = vadd.f32 %v74, %v75
    %v77 = vsel %vm61, %v37, 0.0
    %v78 = vadd.f32 %v76, %v77
    %v79 = vsel %vm61, %v38, 0.0
    %v80 = vadd.f32 %v78, %v79
    %v81 = vsel %vm61, %v39, 0.0
    %v82 = vadd.f32 %v80, %v81
    %v83 = vsel %vm61, %v40, 0.0
    %v84 = vadd.f32 %v82, %v83
    %v85 = vsel %vm61, %v41, 0.0
    %v86 = vadd.f32 %v84, %v85
    %v87 = vsel %vm61, %v42, 0.0
    %v88 = vadd.f32 %v86, %v87
    %v89 = vsel %vm61, %v43, 0.0
    %v90 = vadd.f32 %v88, %v89
    %v91 = vsel %vm61, %v44, 0.0
    %v92 = vadd.f32 %v90, %v91
    %93 = vadd.xlane.f32.xlu0 %v92
    %v94 = vpop.xlane.xlu0 %93
    %v95 = vrot.slane %v94, 4
    %v96 = vadd.f32 %v94, %v95
    %v97 = vrot.slane %v96, 2
    %v98 = vadd.f32 %v96, %v97
    %v99 = vrot.slane %v98, 1
    %v100 = vadd.f32 %v98, %v99
    %s101 = vtos %v100
    %v102 = vstv %s101
    %v103 = vadd.f32 %v24, %v102
    %vm104 = vcmask 0
    %105 = vst.msk [vmem:[#allocation2] sm:$0x1] %vm104, %v103
    // Predicated region
    $region14: #{vqwae_forward.3} parent=1 // pred_check
      %p106 = pneg %p12
    $region15: #{vqwae_forward.3} parent=1 // pred_check_branch
      %108 = sbr.rel (%p106) target = $region17
    $region16: #{vqwae_forward.3} parent=1 // pred_region
      %v109 = vld [vmem:[#allocation2] sm:$0x1]
      %v110 = vmul.f32 %v109, 0.00048828125
      %111 = vst.msk [vmem:[#allocation3] sm:$0x1] %vm104, %v110
    $region17: #{vqwae_forward.3} parent=1 // pred_fallthru
      _
    // Predicated region
    $region18: #{vqwae_forward.3} parent=1 // pred_check
      _
    $region19: #{vqwae_forward.3} parent=1 // pred_check_branch
      %113 = sbr.rel (0) target = $region21
    $region20: #{vqwae_forward.3} parent=1 // pred_region
      %115 = vsyncadd [#allocation4], 0
      %s117 = sshll.u32 [#allocation3], 4
      %s118 = int_to_ptr.vmem [resolvable:$true] %s117
      %s119 = sshll.u32 %s2, 4
      %s120 = int_to_ptr.hbm [resolvable:$true] %s119
      %122 = dma.vmem_to_hbm [thread:$0]  %s118, 16, %s120, [#allocation4]
    $region21: #{vqwae_forward.3} parent=1 // pred_fallthru
      _
    // Predicated region
    $region22: #{vqwae_forward.3} parent=1 // pred_check
      _
    $region23: #{vqwae_forward.3} parent=1 // pred_check_branch
      %124 = sbr.rel (0) target = $region25
    $region24: #{vqwae_forward.3} parent=1 // pred_region
      %126 = dma.done [#allocation4], 16
    $region25: #{vqwae_forward.3} parent=1 // pred_fallthru
      _
    %127 = vsyncpa [#allocation4], 1

// kernel: vqwae_forward.2
$region0: #{vqwae_forward.2}
  #allocation0 [shape = 'u32[]', space=smem, size = 0x4, offset = 0x4, fixed_abs, tag = 'smem constant byte address 0x4 - core index']
  #allocation1 [shape = 'u32[72,128]{1,0:T(1,128)}', space=vmem, size = 0x9000, scoped, tag = 'internal scratch']
  #allocation2 [shape = 'f32[1,128]{1,0:T(1,128)}', space=vmem, size = 0x200, scoped, tag = 'scratch operand']
  %s0 = inlined_call_operand.vmem [shape: bf16[128,64], index: 0, kind: input, shape index: {}]
  %s1 = inlined_call_operand.vmem [shape: bf16[64,128], index: 1, kind: input, shape index: {}]
  %s2 = inlined_call_operand.vmem [shape: f32[1,128], index: 2, kind: input, shape index: {}]
  %s3 = inlined_call_operand.vmem [shape: bf16[128,128], index: 3, kind: input, shape index: {}]
  %s4 = inlined_call_operand.vmem [shape: f32[1,128], index: 4, kind: input, shape index: {}]
  %s5 = inlined_call_operand.vmem [shape: bf16[128,128], index: 5, kind: input, shape index: {}]
  %s6 = inlined_call_operand.vmem [shape: f32[1,128], index: 6, kind: input, shape index: {}]
  %s7 = inlined_call_operand.vmem [shape: bf16[128,16], index: 7, kind: input, shape index: {}]
  %s8 = inlined_call_operand.vmem [shape: f32[1,16], index: 8, kind: input, shape index: {}]
  %s9 = inlined_call_operand.vmem [shape: f32[128,16], index: 9, kind: output, shape index: {0}]
  %s10 = inlined_call_operand.vmem [shape: f32[128,128], index: 10, kind: output, shape index: {1}]
  %s11 = inlined_call_operand.vmem [shape: s32[128,1], index: 11, kind: output, shape index: {2}]
  %s12 = inlined_call_operand.hbm [shape: f32[1,1], index: 12, kind: output, shape index: {3}]
  %13 = xla_tuple %s9, %s10, %s11, %s12
  %s14 = sld [smem:[#allocation0]]
  $region78: #{vqwae_forward.2} parent=0
    _
  %s16 = ssub.s32 1, %s14
  %s17 = scalar_select 0, %s16, %s14
  $region1: #{vqwae_forward.2} parent=0
    #allocation3 [shape = 'u8[512]{0}', space=vmem, size = 0x400, scoped, tag = 'output window, operand 3, single buffered']
    #allocation4 [shape = 's32[1]{0}', space=sflag, size = 0x4, scoped, tag = 'scoped memory for vqwae_forward.2']
    %18 = vsyncpa [#allocation4], 0
    // Predicated region
    $region2: #{vqwae_forward.2} parent=1 // pred_check
      _
    $region3: #{vqwae_forward.2} parent=1 // pred_check_branch
      %20 = sbr.rel (0) target = $region5
    $region4: #{vqwae_forward.2} parent=1 // pred_region
      _
    $region5: #{vqwae_forward.2} parent=1 // pred_fallthru
      _
    // Predicated region
    $region6: #{vqwae_forward.2} parent=1 // pred_check
      _
    $region7: #{vqwae_forward.2} parent=1 // pred_check_branch
      %22 = sbr.rel (0) target = $region9
    $region8: #{vqwae_forward.2} parent=1 // pred_region
      _
    $region9: #{vqwae_forward.2} parent=1 // pred_fallthru
      _
    // Predicated region
    $region10: #{vqwae_forward.2} parent=1 // pred_check
      _
    $region11: #{vqwae_forward.2} parent=1 // pred_check_branch
      %24 = sbr.rel (0) target = $region13
    $region12: #{vqwae_forward.2} parent=1 // pred_region
      _
    $region13: #{vqwae_forward.2} parent=1 // pred_fallthru
      _
    // Predicated region
    $region14: #{vqwae_forward.2} parent=1 // pred_check
      _
    $region15: #{vqwae_forward.2} parent=1 // pred_check_branch
      %26 = sbr.rel (0) target = $region17
    $region16: #{vqwae_forward.2} parent=1 // pred_region
      _
    $region17: #{vqwae_forward.2} parent=1 // pred_fallthru
      _
    // Predicated region
    $region18: #{vqwae_forward.2} parent=1 // pred_check
      _
    $region19: #{vqwae_forward.2} parent=1 // pred_check_branch
      %28 = sbr.rel (0) target = $region21
    $region20: #{vqwae_forward.2} parent=1 // pred_region
      _
    $region21: #{vqwae_forward.2} parent=1 // pred_fallthru
      _
    // Predicated region
    $region22: #{vqwae_forward.2} parent=1 // pred_check
      _
    $region23: #{vqwae_forward.2} parent=1 // pred_check_branch
      %30 = sbr.rel (0) target = $region25
    $region24: #{vqwae_forward.2} parent=1 // pred_region
      _
    $region25: #{vqwae_forward.2} parent=1 // pred_fallthru
      _
    // Predicated region
    $region26: #{vqwae_forward.2} parent=1 // pred_check
      _
    $region27: #{vqwae_forward.2} parent=1 // pred_check_branch
      %32 = sbr.rel (0) target = $region29
    $region28: #{vqwae_forward.2} parent=1 // pred_region
      _
    $region29: #{vqwae_forward.2} parent=1 // pred_fallthru
      _
    // Predicated region
    $region30: #{vqwae_forward.2} parent=1 // pred_check
      _
    $region31: #{vqwae_forward.2} parent=1 // pred_check_branch
      %34 = sbr.rel (0) target = $region33
    $region32: #{vqwae_forward.2} parent=1 // pred_region
      _
    $region33: #{vqwae_forward.2} parent=1 // pred_fallthru
      _
    // Predicated region
    $region34: #{vqwae_forward.2} parent=1 // pred_check
      _
    $region35: #{vqwae_forward.2} parent=1 // pred_check_branch
      %36 = sbr.rel (0) target = $region37
    $region36: #{vqwae_forward.2} parent=1 // pred_region
      _
    $region37: #{vqwae_forward.2} parent=1 // pred_fallthru
      _
    %p38 = scmp.eq.s32.totalorder 0, 0
    // Predicated region
    $region38: #{vqwae_forward.2} parent=1 // pred_check
      %p39 = pneg %p38
    $region39: #{vqwae_forward.2} parent=1 // pred_check_branch
      %41 = sbr.rel (%p39) target = $region41
    $region40: #{vqwae_forward.2} parent=1 // pred_region
      %42 = vst [vmem:[#allocation2] sm:$0x1] 0.0
    $region41: #{vqwae_forward.2} parent=1 // pred_fallthru
      _
    %v43 = vld [vmem:[%s0] sm:$0xf]
    %v44 = vld [vmem:[%s0 + $0x4] sm:$0xf]
    %v45 = vld [vmem:[%s0 + $0x8] sm:$0xf]
    %v46 = vld [vmem:[%s0 + $0xc] sm:$0xf]
    %v47 = vld [vmem:[%s0 + $0x10] sm:$0xf]
    %v48 = vld [vmem:[%s0 + $0x14] sm:$0xf]
    %v49 = vld [vmem:[%s0 + $0x18] sm:$0xf]
    %v50 = vld [vmem:[%s0 + $0x1c] sm:$0xf]
    %v51 = vld [vmem:[%s0 + $0x20] sm:$0xf]
    %v52 = vld [vmem:[%s0 + $0x24] sm:$0xf]
    %v53 = vld [vmem:[%s0 + $0x28] sm:$0xf]
    %v54 = vld [vmem:[%s0 + $0x2c] sm:$0xf]
    %v55 = vld [vmem:[%s0 + $0x30] sm:$0xf]
    %v56 = vld [vmem:[%s0 + $0x34] sm:$0xf]
    %v57 = vld [vmem:[%s0 + $0x38] sm:$0xf]
    %v58 = vld [vmem:[%s0 + $0x3c] sm:$0xf]
    %v59 = vld [vmem:[%s1] sm:$0xf]
    %v60 = vld [vmem:[%s1 + $0x4] sm:$0xf]
    %v61 = vld [vmem:[%s1 + $0x8] sm:$0xf]
    %v62 = vld [vmem:[%s1 + $0xc] sm:$0xf]
    %v63 = vld [vmem:[%s1 + $0x10] sm:$0xf]
    %v64 = vld [vmem:[%s1 + $0x14] sm:$0xf]
    %v65 = vld [vmem:[%s1 + $0x18] sm:$0xf]
    %v66 = vld [vmem:[%s1 + $0x1c] sm:$0xf]
    %v67 = vld [vmem:[%s2] sm:$0x1]
    %v69 = vperm.slane %v67, 0
    %v87 = vunpack.c.l.b16 %v43
    %v88 = vunpack.c.l.b16 %v44
    %v89 = vunpack.c.l.b16 %v45
    %v90 = vunpack.c.l.b16 %v46
    %v91 = vunpack.c.l.b16 %v47
    %v92 = vunpack.c.l.b16 %v48
    %v93 = vunpack.c.l.b16 %v49
    %v94 = vunpack.c.l.b16 %v50
    %v95 = vunpack.c.l.b16 %v51
    %v96 = vunpack.c.l.b16 %v52
    %v97 = vunpack.c.l.b16 %v53
    %v98 = vunpack.c.l.b16 %v54
    %v99 = vunpack.c.l.b16 %v55
    %v100 = vunpack.c.l.b16 %v56
    %v101 = vunpack.c.l.b16 %v57
    %v102 = vunpack.c.l.b16 %v58
    %v103 = vpack.c.b16 %v88, %v87
    %v104 = vpack.c.b16 %v90, %v89
    %v105 = vpack.c.b16 %v92, %v91
    %v106 = vpack.c.b16 %v94, %v93
    %v107 = vpack.c.b16 %v96, %v95
    %v108 = vpack.c.b16 %v98, %v97
    %v109 = vpack.c.b16 %v100, %v99
    %v110 = vpack.c.b16 %v102, %v101
    %v119 = vunpack.c.l.b16 %v59
    %v120 = vunpack.c.l.b16 %v60
    %v121 = vunpack.c.l.b16 %v61
    %v122 = vunpack.c.l.b16 %v62
    %v123 = vunpack.c.l.b16 %v63
    %v124 = vunpack.c.l.b16 %v64
    %v125 = vunpack.c.l.b16 %v65
    %v126 = vunpack.c.l.b16 %v66
    %v127 = vpack.c.b16 %v120, %v119
    %v128 = vpack.c.b16 %v122, %v121
    %v129 = vpack.c.b16 %v124, %v123
    %v130 = vpack.c.b16 %v126, %v125
    %vm135 = vcmask 523264
    %v137 = vsel %vm135, %v103, 0
    %v140 = vsel %vm135, %v104, 0
    %v143 = vsel %vm135, %v105, 0
    %v146 = vsel %vm135, %v106, 0
    %v149 = vsel %vm135, %v107, 0
    %v152 = vsel %vm135, %v108, 0
    %v155 = vsel %vm135, %v109, 0
    %v158 = vsel %vm135, %v110, 0
    %160 = vmatpush.bf16.msra.mxu0 0
    %161 = vmatpush.bf16.msra.mxu0 0
    %162 = vmatpush.bf16.msra.mxu0 0
    %163 = vmatpush.bf16.msra.mxu0 0
    %164 = vmatpush.bf16.msra.mxu0 %v130
    %165 = vmatpush.bf16.msra.mxu0 %v129
    %166 = vmatpush.bf16.msra.mxu0 %v128
    %167 = vmatpush.bf16.msra.mxu0 %v127
    %168 = vmatmul.bf16.gmra.mxu0 %v137
    %v169 = vpop.f32.mrf.mxu0
    %v170 = vadd.f32 %v69, %v169
    %v171 = vpop.f32.mrf.mxu0
    %v172 = vadd.f32 %v69, %v171
    %173 = vmatmul.bf16.gmra.mxu0 %v140
    %v174 = vpop.f32.mrf.mxu0
    %v175 = vadd.f32 %v69, %v174
    %v176 = vpop.f32.mrf.mxu0
    %v177 = vadd.f32 %v69, %v176
    %178 = vmatmul.bf16.gmra.mxu0 %v143
    %v179 = vpop.f32.mrf.mxu0
    %v180 = vadd.f32 %v69, %v179
    %v181 = vpop.f32.mrf.mxu0
    %v182 = vadd.f32 %v69, %v181
    %183 = vmatmul.bf16.gmra.mxu0 %v146
    %v184 = vpop.f32.mrf.mxu0
    %v185 = vadd.f32 %v69, %v184
    %v186 = vpop.f32.mrf.mxu0
    %v187 = vadd.f32 %v69, %v186
    %188 = vmatmul.bf16.gmra.mxu0 %v149
    %v189 = vpop.f32.mrf.mxu0
    %v190 = vadd.f32 %v69, %v189
    %v191 = vpop.f32.mrf.mxu0
    %v192 = vadd.f32 %v69, %v191
    %193 = vmatmul.bf16.gmra.mxu0 %v152
    %v194 = vpop.f32.mrf.mxu0
    %v195 = vadd.f32 %v69, %v194
    %v196 = vpop.f32.mrf.mxu0
    %v197 = vadd.f32 %v69, %v196
    %198 = vmatmul.bf16.gmra.mxu0 %v155
    %v199 = vpop.f32.mrf.mxu0
    %v200 = vadd.f32 %v69, %v199
    %v201 = vpop.f32.mrf.mxu0
    %v202 = vadd.f32 %v69, %v201
    %203 = vmatmul.bf16.gmra.mxu0 %v158
    %v204 = vpop.f32.mrf.mxu0
    %v205 = vadd.f32 %v69, %v204
    %v206 = vpop.f32.mrf.mxu0
    %v207 = vadd.f32 %v69, %v206
    %208 = vdwg.mxu0
    %v209 = vmax.f32 %v170, 0.0
    %v210 = vmax.f32 %v172, 0.0
    %v211 = vmax.f32 %v175, 0.0
    %v212 = vmax.f32 %v177, 0.0
    %v213 = vmax.f32 %v180, 0.0
    %v214 = vmax.f32 %v182, 0.0
    %v215 = vmax.f32 %v185, 0.0
    %v216 = vmax.f32 %v187, 0.0
    %v217 = vmax.f32 %v190, 0.0
    %v218 = vmax.f32 %v192, 0.0
    %v219 = vmax.f32 %v195, 0.0
    %v220 = vmax.f32 %v197, 0.0
    %v221 = vmax.f32 %v200, 0.0
    %v222 = vmax.f32 %v202, 0.0
    %v223 = vmax.f32 %v205, 0.0
    %v224 = vmax.f32 %v207, 0.0
    %v225 = vpack.c.bf16 %v210, %v209
    %v226 = vpack.c.bf16 %v212, %v211
    %v227 = vpack.c.bf16 %v214, %v213
    %v228 = vpack.c.bf16 %v216, %v215
    %v229 = vpack.c.bf16 %v218, %v217
    %v230 = vpack.c.bf16 %v220, %v219
    %v231 = vpack.c.bf16 %v222, %v221
    %v232 = vpack.c.bf16 %v224, %v223
    %v233 = vld [vmem:[%s3] sm:$0xf]
    %v234 = vld [vmem:[%s3 + $0x4] sm:$0xf]
    %v235 = vld [vmem:[%s3 + $0x8] sm:$0xf]
    %v236 = vld [vmem:[%s3 + $0xc] sm:$0xf]
    %v237 = vld [vmem:[%s3 + $0x10] sm:$0xf]
    %v238 = vld [vmem:[%s3 + $0x14] sm:$0xf]
    %v239 = vld [vmem:[%s3 + $0x18] sm:$0xf]
    %v240 = vld [vmem:[%s3 + $0x1c] sm:$0xf]
    %v241 = vld [vmem:[%s3 + $0x20] sm:$0xf]
    %v242 = vld [vmem:[%s3 + $0x24] sm:$0xf]
    %v243 = vld [vmem:[%s3 + $0x28] sm:$0xf]
    %v244 = vld [vmem:[%s3 + $0x2c] sm:$0xf]
    %v245 = vld [vmem:[%s3 + $0x30] sm:$0xf]
    %v246 = vld [vmem:[%s3 + $0x34] sm:$0xf]
    %v247 = vld [vmem:[%s3 + $0x38] sm:$0xf]
    %v248 = vld [vmem:[%s3 + $0x3c] sm:$0xf]
    %v249 = vld [vmem:[%s4] sm:$0x1]
    %v251 = vperm.slane %v249, 0
    %v269 = vunpack.c.l.b16 %v233
    %v270 = vunpack.c.l.b16 %v234
    %v271 = vunpack.c.l.b16 %v235
    %v272 = vunpack.c.l.b16 %v236
    %v273 = vunpack.c.l.b16 %v237
    %v274 = vunpack.c.l.b16 %v238
    %v275 = vunpack.c.l.b16 %v239
    %v276 = vunpack.c.l.b16 %v240
    %v277 = vunpack.c.l.b16 %v241
    %v278 = vunpack.c.l.b16 %v242
    %v279 = vunpack.c.l.b16 %v243
    %v280 = vunpack.c.l.b16 %v244
    %v281 = vunpack.c.l.b16 %v245
    %v282 = vunpack.c.l.b16 %v246
    %v283 = vunpack.c.l.b16 %v247
    %v284 = vunpack.c.l.b16 %v248
    %v285 = vpack.c.b16 %v270, %v269
    %v286 = vpack.c.b16 %v272, %v271
    %v287 = vpack.c.b16 %v274, %v273
    %v288 = vpack.c.b16 %v276, %v275
    %v289 = vpack.c.b16 %v278, %v277
    %v290 = vpack.c.b16 %v280, %v279
    %v291 = vpack.c.b16 %v282, %v281
    %v292 = vpack.c.b16 %v284, %v283
    %301 = vmatpush.bf16.msra.mxu0 %v292
    %302 = vmatpush.bf16.msra.mxu0 %v291
    %303 = vmatpush.bf16.msra.mxu0 %v290
    %304 = vmatpush.bf16.msra.mxu0 %v289
    %305 = vmatpush.bf16.msra.mxu0 %v288
    %306 = vmatpush.bf16.msra.mxu0 %v287
    %307 = vmatpush.bf16.msra.mxu0 %v286
    %308 = vmatpush.bf16.msra.mxu0 %v285
    %309 = vmatmul.bf16.gmra.mxu0 %v225
    %v310 = vpop.f32.mrf.mxu0
    %v311 = vadd.f32 %v251, %v310
    %v312 = vpop.f32.mrf.mxu0
    %v313 = vadd.f32 %v251, %v312
    %314 = vmatmul.bf16.gmra.mxu0 %v226
    %v315 = vpop.f32.mrf.mxu0
    %v316 = vadd.f32 %v251, %v315
    %v317 = vpop.f32.mrf.mxu0
    %v318 = vadd.f32 %v251, %v317
    %319 = vmatmul.bf16.gmra.mxu0 %v227
    %v320 = vpop.f32.mrf.mxu0
    %v321 = vadd.f32 %v251, %v320
    %v322 = vpop.f32.mrf.mxu0
    %v323 = vadd.f32 %v251, %v322
    %324 = vmatmul.bf16.gmra.mxu0 %v228
    %v325 = vpop.f32.mrf.mxu0
    %v326 = vadd.f32 %v251, %v325
    %v327 = vpop.f32.mrf.mxu0
    %v328 = vadd.f32 %v251, %v327
    %329 = vmatmul.bf16.gmra.mxu0 %v229
    %v330 = vpop.f32.mrf.mxu0
    %v331 = vadd.f32 %v251, %v330
    %v332 = vpop.f32.mrf.mxu0
    %v333 = vadd.f32 %v251, %v332
    %334 = vmatmul.bf16.gmra.mxu0 %v230
    %v335 = vpop.f32.mrf.mxu0
    %v336 = vadd.f32 %v251, %v335
    %v337 = vpop.f32.mrf.mxu0
    %v338 = vadd.f32 %v251, %v337
    %339 = vmatmul.bf16.gmra.mxu0 %v231
    %v340 = vpop.f32.mrf.mxu0
    %v341 = vadd.f32 %v251, %v340
    %v342 = vpop.f32.mrf.mxu0
    %v343 = vadd.f32 %v251, %v342
    %344 = vmatmul.bf16.gmra.mxu0 %v232
    %v345 = vpop.f32.mrf.mxu0
    %v346 = vadd.f32 %v251, %v345
    %v347 = vpop.f32.mrf.mxu0
    %v348 = vadd.f32 %v251, %v347
    %349 = vdwg.mxu0
    %v350 = vpack.c.bf16 %v313, %v311
    %v351 = vpack.c.bf16 %v318, %v316
    %v352 = vpack.c.bf16 %v323, %v321
    %v353 = vpack.c.bf16 %v328, %v326
    %v354 = vpack.c.bf16 %v333, %v331
    %v355 = vpack.c.bf16 %v338, %v336
    %v356 = vpack.c.bf16 %v343, %v341
    %v357 = vpack.c.bf16 %v348, %v346
    %v358 = vld [vmem:[%s5] sm:$0xf]
    %v359 = vld [vmem:[%s5 + $0x4] sm:$0xf]
    %v360 = vld [vmem:[%s5 + $0x8] sm:$0xf]
    %v361 = vld [vmem:[%s5 + $0xc] sm:$0xf]
    %v362 = vld [vmem:[%s5 + $0x10] sm:$0xf]
    %v363 = vld [vmem:[%s5 + $0x14] sm:$0xf]
    %v364 = vld [vmem:[%s5 + $0x18] sm:$0xf]
    %v365 = vld [vmem:[%s5 + $0x1c] sm:$0xf]
    %v366 = vld [vmem:[%s5 + $0x20] sm:$0xf]
    %v367 = vld [vmem:[%s5 + $0x24] sm:$0xf]
    %v368 = vld [vmem:[%s5 + $0x28] sm:$0xf]
    %v369 = vld [vmem:[%s5 + $0x2c] sm:$0xf]
    %v370 = vld [vmem:[%s5 + $0x30] sm:$0xf]
    %v371 = vld [vmem:[%s5 + $0x34] sm:$0xf]
    %v372 = vld [vmem:[%s5 + $0x38] sm:$0xf]
    %v373 = vld [vmem:[%s5 + $0x3c] sm:$0xf]
    %v390 = vunpack.c.l.b16 %v358
    %v391 = vunpack.c.l.b16 %v359
    %v392 = vunpack.c.l.b16 %v360
    %v393 = vunpack.c.l.b16 %v361
    %v394 = vunpack.c.l.b16 %v362
    %v395 = vunpack.c.l.b16 %v363
    %v396 = vunpack.c.l.b16 %v364
    %v397 = vunpack.c.l.b16 %v365
    %v398 = vunpack.c.l.b16 %v366
    %v399 = vunpack.c.l.b16 %v367
    %v400 = vunpack.c.l.b16 %v368
    %v401 = vunpack.c.l.b16 %v369
    %v402 = vunpack.c.l.b16 %v370
    %v403 = vunpack.c.l.b16 %v371
    %v404 = vunpack.c.l.b16 %v372
    %v405 = vunpack.c.l.b16 %v373
    %v406 = vpack.c.b16 %v391, %v390
    %v407 = vpack.c.b16 %v393, %v392
    %v408 = vpack.c.b16 %v395, %v394
    %v409 = vpack.c.b16 %v397, %v396
    %v410 = vpack.c.b16 %v399, %v398
    %v411 = vpack.c.b16 %v401, %v400
    %v412 = vpack.c.b16 %v403, %v402
    %v413 = vpack.c.b16 %v405, %v404
    %422 = vmatpush.bf16.xpose.msra.mxu0 %v413
    %423 = vmatpush.bf16.xpose.msra.mxu0 %v412
    %424 = vmatpush.bf16.xpose.msra.mxu0 %v411
    %425 = vmatpush.bf16.xpose.msra.mxu0 %v410
    %426 = vmatpush.bf16.xpose.msra.mxu0 %v409
    %427 = vmatpush.bf16.xpose.msra.mxu0 %v408
    %428 = vmatpush.bf16.xpose.msra.mxu0 %v407
    %429 = vmatpush.bf16.xpose.msra.mxu0 %v406
    %430 = vmatmul.bf16.gmra.mxu0 %v350
    %v431 = vpop.f32.mrf.mxu0
    %v432 = vadd.f32 0.0, %v431
    %v433 = vpop.f32.mrf.mxu0
    %v434 = vadd.f32 0.0, %v433
    %435 = vmatmul.bf16.gmra.mxu0 %v351
    %v436 = vpop.f32.mrf.mxu0
    %v437 = vadd.f32 0.0, %v436
    %v438 = vpop.f32.mrf.mxu0
    %v439 = vadd.f32 0.0, %v438
    %440 = vmatmul.bf16.gmra.mxu0 %v352
    %v441 = vpop.f32.mrf.mxu0
    %v442 = vadd.f32 0.0, %v441
    %v443 = vpop.f32.mrf.mxu0
    %v444 = vadd.f32 0.0, %v443
    %445 = vmatmul.bf16.gmra.mxu0 %v353
    %v446 = vpop.f32.mrf.mxu0
    %v447 = vadd.f32 0.0, %v446
    %v448 = vpop.f32.mrf.mxu0
    %v449 = vadd.f32 0.0, %v448
    %450 = vmatmul.bf16.gmra.mxu0 %v354
    %v451 = vpop.f32.mrf.mxu0
    %v452 = vadd.f32 0.0, %v451
    %v453 = vpop.f32.mrf.mxu0
    %v454 = vadd.f32 0.0, %v453
    %455 = vmatmul.bf16.gmra.mxu0 %v355
    %v456 = vpop.f32.mrf.mxu0
    %v457 = vadd.f32 0.0, %v456
    %v458 = vpop.f32.mrf.mxu0
    %v459 = vadd.f32 0.0, %v458
    %460 = vmatmul.bf16.gmra.mxu0 %v356
    %v461 = vpop.f32.mrf.mxu0
    %v462 = vadd.f32 0.0, %v461
    %v463 = vpop.f32.mrf.mxu0
    %v464 = vadd.f32 0.0, %v463
    %465 = vmatmul.bf16.gmra.mxu0 %v357
    %v466 = vpop.f32.mrf.mxu0
    %v467 = vadd.f32 0.0, %v466
    %v468 = vpop.f32.mrf.mxu0
    %v469 = vadd.f32 0.0, %v468
    %470 = vdwg.mxu0
    %v471 = vld [vmem:[%s6] sm:$0x1]
    %v472 = vmul.f32 %v432, 2.0
    %v473 = vmul.f32 %v434, 2.0
    %v474 = vmul.f32 %v437, 2.0
    %v475 = vmul.f32 %v439, 2.0
    %v476 = vmul.f32 %v442, 2.0
    %v477 = vmul.f32 %v444, 2.0
    %v478 = vmul.f32 %v447, 2.0
    %v479 = vmul.f32 %v449, 2.0
    %v480 = vmul.f32 %v452, 2.0
    %v481 = vmul.f32 %v454, 2.0
    %v482 = vmul.f32 %v457, 2.0
    %v483 = vmul.f32 %v459, 2.0
    %v484 = vmul.f32 %v462, 2.0
    %v485 = vmul.f32 %v464, 2.0
    %v486 = vmul.f32 %v467, 2.0
    %v487 = vmul.f32 %v469, 2.0
    %v489 = vperm.slane %v471, 0
    %v491 = vsub.f32 %v489, %v472
    %v492 = vsub.f32 %v489, %v473
    %v493 = vsub.f32 %v489, %v474
    %v494 = vsub.f32 %v489, %v475
    %v495 = vsub.f32 %v489, %v476
    %v496 = vsub.f32 %v489, %v477
    %v497 = vsub.f32 %v489, %v478
    %v498 = vsub.f32 %v489, %v479
    %v499 = vsub.f32 %v489, %v480
    %v500 = vsub.f32 %v489, %v481
    %v501 = vsub.f32 %v489, %v482
    %v502 = vsub.f32 %v489, %v483
    %v503 = vsub.f32 %v489, %v484
    %v504 = vsub.f32 %v489, %v485
    %v505 = vsub.f32 %v489, %v486
    %v506 = vsub.f32 %v489, %v487
    %507 = vmin.xlane.f32.xlu0 %v491
    %v508 = vpop.xlane.xlu0 %507
    %509 = vmin.xlane.f32.xlu0 %v492
    %v510 = vpop.xlane.xlu0 %509
    %511 = vmin.xlane.f32.xlu0 %v493
    %v512 = vpop.xlane.xlu0 %511
    %513 = vmin.xlane.f32.xlu0 %v494
    %v514 = vpop.xlane.xlu0 %513
    %515 = vmin.xlane.f32.xlu0 %v495
    %v516 = vpop.xlane.xlu0 %515
    %517 = vmin.xlane.f32.xlu0 %v496
    %v518 = vpop.xlane.xlu0 %517
    %519 = vmin.xlane.f32.xlu0 %v497
    %v520 = vpop.xlane.xlu0 %519
    %521 = vmin.xlane.f32.xlu0 %v498
    %v522 = vpop.xlane.xlu0 %521
    %523 = vmin.xlane.f32.xlu0 %v499
    %v524 = vpop.xlane.xlu0 %523
    %525 = vmin.xlane.f32.xlu0 %v500
    %v526 = vpop.xlane.xlu0 %525
    %527 = vmin.xlane.f32.xlu0 %v501
    %v528 = vpop.xlane.xlu0 %527
    %529 = vmin.xlane.f32.xlu0 %v502
    %v530 = vpop.xlane.xlu0 %529
    %531 = vmin.xlane.f32.xlu0 %v503
    %v532 = vpop.xlane.xlu0 %531
    %533 = vmin.xlane.f32.xlu0 %v504
    %v534 = vpop.xlane.xlu0 %533
    %535 = vmin.xlane.f32.xlu0 %v505
    %v536 = vpop.xlane.xlu0 %535
    %537 = vmin.xlane.f32.xlu0 %v506
    %v538 = vpop.xlane.xlu0 %537
    %v539 = vlaneseq
    %v540 = vand.u32 %v539, 127
    %vm541 = vcmp.le.f32.partialorder %v491, %v508
    %vm542 = vcmp.le.f32.partialorder %v492, %v510
    %vm543 = vcmp.le.f32.partialorder %v493, %v512
    %vm544 = vcmp.le.f32.partialorder %v494, %v514
    %vm545 = vcmp.le.f32.partialorder %v495, %v516
    %vm546 = vcmp.le.f32.partialorder %v496, %v518
    %vm547 = vcmp.le.f32.partialorder %v497, %v520
    %vm548 = vcmp.le.f32.partialorder %v498, %v522
    %vm549 = vcmp.le.f32.partialorder %v499, %v524
    %vm550 = vcmp.le.f32.partialorder %v500, %v526
    %vm551 = vcmp.le.f32.partialorder %v501, %v528
    %vm552 = vcmp.le.f32.partialorder %v502, %v530
    %vm553 = vcmp.le.f32.partialorder %v503, %v532
    %vm554 = vcmp.le.f32.partialorder %v504, %v534
    %vm555 = vcmp.le.f32.partialorder %v505, %v536
    %vm556 = vcmp.le.f32.partialorder %v506, %v538
    %v557 = vsel %vm541, %v540, 128
    %v558 = vsel %vm542, %v540, 128
    %v559 = vsel %vm543, %v540, 128
    %v560 = vsel %vm544, %v540, 128
    %v561 = vsel %vm545, %v540, 128
    %v562 = vsel %vm546, %v540, 128
    %v563 = vsel %vm547, %v540, 128
    %v564 = vsel %vm548, %v540, 128
    %v565 = vsel %vm549, %v540, 128
    %v566 = vsel %vm550, %v540, 128
    %v567 = vsel %vm551, %v540, 128
    %v568 = vsel %vm552, %v540, 128
    %v569 = vsel %vm553, %v540, 128
    %v570 = vsel %vm554, %v540, 128
    %v571 = vsel %vm555, %v540, 128
    %v572 = vsel %vm556, %v540, 128
    %v573 = vand.u32 %v557, 65535
    %v574 = vshra.s32 %v557, 16
    %v575 = vcvt.s32.f32 %v573
    %v576 = vcvt.s32.f32 %v574
    %577 = vmin.xlane.f32.xlu0 %v576
    %v578 = vpop.xlane.xlu0 %577
    %vm579 = vcmp.eq.f32.partialorder %v576, %v578
    %v580 = vsel %vm579, %v575, inf
    %581 = vmin.xlane.f32.xlu0 %v580
    %v582 = vpop.xlane.xlu0 %581
    %v583 = vcvt.f32.s32 %v582
    %v584 = vcvt.f32.s32 %v578
    %v585 = vshll.u32 %v584, 16
    %v586 = vadd.s32 %v585, %v583
    %v587 = vand.u32 %v558, 65535
    %v588 = vshra.s32 %v558, 16
    %v589 = vcvt.s32.f32 %v587
    %v590 = vcvt.s32.f32 %v588
    %591 = vmin.xlane.f32.xlu0 %v590
    %v592 = vpop.xlane.xlu0 %591
    %vm593 = vcmp.eq.f32.partialorder %v590, %v592
    %v594 = vsel %vm593, %v589, inf
    %595 = vmin.xlane.f32.xlu0 %v594
    %v596 = vpop.xlane.xlu0 %595
    %v597 = vcvt.f32.s32 %v596
    %v598 = vcvt.f32.s32 %v592
    %v599 = vshll.u32 %v598, 16
    %v600 = vadd.s32 %v599, %v597
    %v601 = vand.u32 %v559, 65535
    %v602 = vshra.s32 %v559, 16
    %v603 = vcvt.s32.f32 %v601
    %v604 = vcvt.s32.f32 %v602
    %605 = vmin.xlane.f32.xlu0 %v604
    %v606 = vpop.xlane.xlu0 %605
    %vm607 = vcmp.eq.f32.partialorder %v604, %v606
    %v608 = vsel %vm607, %v603, inf
    %609 = vmin.xlane.f32.xlu0 %v608
    %v610 = vpop.xlane.xlu0 %609
    %v611 = vcvt.f32.s32 %v610
    %v612 = vcvt.f32.s32 %v606
    %v613 = vshll.u32 %v612, 16
    %v614 = vadd.s32 %v613, %v611
    %v615 = vand.u32 %v560, 65535
    %v616 = vshra.s32 %v560, 16
    %v617 = vcvt.s32.f32 %v615
    %v618 = vcvt.s32.f32 %v616
    %619 = vmin.xlane.f32.xlu0 %v618
    %v620 = vpop.xlane.xlu0 %619
    %vm621 = vcmp.eq.f32.partialorder %v618, %v620
    %v622 = vsel %vm621, %v617, inf
    %623 = vmin.xlane.f32.xlu0 %v622
    %v624 = vpop.xlane.xlu0 %623
    %v625 = vcvt.f32.s32 %v624
    %v626 = vcvt.f32.s32 %v620
    %v627 = vshll.u32 %v626, 16
    %v628 = vadd.s32 %v627, %v625
    %v629 = vand.u32 %v561, 65535
    %v630 = vshra.s32 %v561, 16
    %v631 = vcvt.s32.f32 %v629
    %v632 = vcvt.s32.f32 %v630
    %633 = vmin.xlane.f32.xlu0 %v632
    %v634 = vpop.xlane.xlu0 %633
    %vm635 = vcmp.eq.f32.partialorder %v632, %v634
    %v636 = vsel %vm635, %v631, inf
    %637 = vmin.xlane.f32.xlu0 %v636
    %v638 = vpop.xlane.xlu0 %637
    %v639 = vcvt.f32.s32 %v638
    %v640 = vcvt.f32.s32 %v634
    %v641 = vshll.u32 %v640, 16
    %v642 = vadd.s32 %v641, %v639
    %v643 = vand.u32 %v562, 65535
    %v644 = vshra.s32 %v562, 16
    %v645 = vcvt.s32.f32 %v643
    %v646 = vcvt.s32.f32 %v644
    %647 = vmin.xlane.f32.xlu0 %v646
    %v648 = vpop.xlane.xlu0 %647
    %vm649 = vcmp.eq.f32.partialorder %v646, %v648
    %v650 = vsel %vm649, %v645, inf
    %651 = vmin.xlane.f32.xlu0 %v650
    %v652 = vpop.xlane.xlu0 %651
    %v653 = vcvt.f32.s32 %v652
    %v654 = vcvt.f32.s32 %v648
    %v655 = vshll.u32 %v654, 16
    %v656 = vadd.s32 %v655, %v653
    %v657 = vand.u32 %v563, 65535
    %v658 = vshra.s32 %v563, 16
    %v659 = vcvt.s32.f32 %v657
    %v660 = vcvt.s32.f32 %v658
    %661 = vmin.xlane.f32.xlu0 %v660
    %v662 = vpop.xlane.xlu0 %661
    %vm663 = vcmp.eq.f32.partialorder %v660, %v662
    %v664 = vsel %vm663, %v659, inf
    %665 = vmin.xlane.f32.xlu0 %v664
    %v666 = vpop.xlane.xlu0 %665
    %v667 = vcvt.f32.s32 %v666
    %v668 = vcvt.f32.s32 %v662
    %v669 = vshll.u32 %v668, 16
    %v670 = vadd.s32 %v669, %v667
    %v671 = vand.u32 %v564, 65535
    %v672 = vshra.s32 %v564, 16
    %v673 = vcvt.s32.f32 %v671
    %v674 = vcvt.s32.f32 %v672
    %675 = vmin.xlane.f32.xlu0 %v674
    %v676 = vpop.xlane.xlu0 %675
    %vm677 = vcmp.eq.f32.partialorder %v674, %v676
    %v678 = vsel %vm677, %v673, inf
    %679 = vmin.xlane.f32.xlu0 %v678
    %v680 = vpop.xlane.xlu0 %679
    %v681 = vcvt.f32.s32 %v680
    %v682 = vcvt.f32.s32 %v676
    %v683 = vshll.u32 %v682, 16
    %v684 = vadd.s32 %v683, %v681
    %v685 = vand.u32 %v565, 65535
    %v686 = vshra.s32 %v565, 16
    %v687 = vcvt.s32.f32 %v685
    %v688 = vcvt.s32.f32 %v686
    %689 = vmin.xlane.f32.xlu0 %v688
    %v690 = vpop.xlane.xlu0 %689
    %vm691 = vcmp.eq.f32.partialorder %v688, %v690
    %v692 = vsel %vm691, %v687, inf
    %693 = vmin.xlane.f32.xlu0 %v692
    %v694 = vpop.xlane.xlu0 %693
    %v695 = vcvt.f32.s32 %v694
    %v696 = vcvt.f32.s32 %v690
    %v697 = vshll.u32 %v696, 16
    %v698 = vadd.s32 %v697, %v695
    %v699 = vand.u32 %v566, 65535
    %v700 = vshra.s32 %v566, 16
    %v701 = vcvt.s32.f32 %v699
    %v702 = vcvt.s32.f32 %v700
    %703 = vmin.xlane.f32.xlu0 %v702
    %v704 = vpop.xlane.xlu0 %703
    %vm705 = vcmp.eq.f32.partialorder %v702, %v704
    %v706 = vsel %vm705, %v701, inf
    %707 = vmin.xlane.f32.xlu0 %v706
    %v708 = vpop.xlane.xlu0 %707
    %v709 = vcvt.f32.s32 %v708
    %v710 = vcvt.f32.s32 %v704
    %v711 = vshll.u32 %v710, 16
    %v712 = vadd.s32 %v711, %v709
    %v713 = vand.u32 %v567, 65535
    %v714 = vshra.s32 %v567, 16
    %v715 = vcvt.s32.f32 %v713
    %v716 = vcvt.s32.f32 %v714
    %717 = vmin.xlane.f32.xlu0 %v716
    %v718 = vpop.xlane.xlu0 %717
    %vm719 = vcmp.eq.f32.partialorder %v716, %v718
    %v720 = vsel %vm719, %v715, inf
    %721 = vmin.xlane.f32.xlu0 %v720
    %v722 = vpop.xlane.xlu0 %721
    %v723 = vcvt.f32.s32 %v722
    %v724 = vcvt.f32.s32 %v718
    %v725 = vshll.u32 %v724, 16
    %v726 = vadd.s32 %v725, %v723
    %v727 = vand.u32 %v568, 65535
    %v728 = vshra.s32 %v568, 16
    %v729 = vcvt.s32.f32 %v727
    %v730 = vcvt.s32.f32 %v728
    %731 = vmin.xlane.f32.xlu0 %v730
    %v732 = vpop.xlane.xlu0 %731
    %vm733 = vcmp.eq.f32.partialorder %v730, %v732
    %v734 = vsel %vm733, %v729, inf
    %735 = vmin.xlane.f32.xlu0 %v734
    %v736 = vpop.xlane.xlu0 %735
    %v737 = vcvt.f32.s32 %v736
    %v738 = vcvt.f32.s32 %v732
    %v739 = vshll.u32 %v738, 16
    %v740 = vadd.s32 %v739, %v737
    %v741 = vand.u32 %v569, 65535
    %v742 = vshra.s32 %v569, 16
    %v743 = vcvt.s32.f32 %v741
    %v744 = vcvt.s32.f32 %v742
    %745 = vmin.xlane.f32.xlu0 %v744
    %v746 = vpop.xlane.xlu0 %745
    %vm747 = vcmp.eq.f32.partialorder %v744, %v746
    %v748 = vsel %vm747, %v743, inf
    %749 = vmin.xlane.f32.xlu0 %v748
    %v750 = vpop.xlane.xlu0 %749
    %v751 = vcvt.f32.s32 %v750
    %v752 = vcvt.f32.s32 %v746
    %v753 = vshll.u32 %v752, 16
    %v754 = vadd.s32 %v753, %v751
    %v755 = vand.u32 %v570, 65535
    %v756 = vshra.s32 %v570, 16
    %v757 = vcvt.s32.f32 %v755
    %v758 = vcvt.s32.f32 %v756
    %759 = vmin.xlane.f32.xlu0 %v758
    %v760 = vpop.xlane.xlu0 %759
    %vm761 = vcmp.eq.f32.partialorder %v758, %v760
    %v762 = vsel %vm761, %v757, inf
    %763 = vmin.xlane.f32.xlu0 %v762
    %v764 = vpop.xlane.xlu0 %763
    %v765 = vcvt.f32.s32 %v764
    %v766 = vcvt.f32.s32 %v760
    %v767 = vshll.u32 %v766, 16
    %v768 = vadd.s32 %v767, %v765
    %v769 = vand.u32 %v571, 65535
    %v770 = vshra.s32 %v571, 16
    %v771 = vcvt.s32.f32 %v769
    %v772 = vcvt.s32.f32 %v770
    %773 = vmin.xlane.f32.xlu0 %v772
    %v774 = vpop.xlane.xlu0 %773
    %vm775 = vcmp.eq.f32.partialorder %v772, %v774
    %v776 = vsel %vm775, %v771, inf
    %777 = vmin.xlane.f32.xlu0 %v776
    %v778 = vpop.xlane.xlu0 %777
    %v779 = vcvt.f32.s32 %v778
    %v780 = vcvt.f32.s32 %v774
    %v781 = vshll.u32 %v780, 16
    %v782 = vadd.s32 %v781, %v779
    %v783 = vand.u32 %v572, 65535
    %v784 = vshra.s32 %v572, 16
    %v785 = vcvt.s32.f32 %v783
    %v786 = vcvt.s32.f32 %v784
    %787 = vmin.xlane.f32.xlu0 %v786
    %v788 = vpop.xlane.xlu0 %787
    %vm789 = vcmp.eq.f32.partialorder %v786, %v788
    %v790 = vsel %vm789, %v785, inf
    %791 = vmin.xlane.f32.xlu0 %v790
    %v792 = vpop.xlane.xlu0 %791
    %v793 = vcvt.f32.s32 %v792
    %v794 = vcvt.f32.s32 %v788
    %v795 = vshll.u32 %v794, 16
    %v796 = vadd.s32 %v795, %v793
    %vm797 = vcmp.eq.s32.totalorder %v540, %v586
    %vm798 = vcmp.eq.s32.totalorder %v540, %v600
    %vm799 = vcmp.eq.s32.totalorder %v540, %v614
    %vm800 = vcmp.eq.s32.totalorder %v540, %v628
    %vm801 = vcmp.eq.s32.totalorder %v540, %v642
    %vm802 = vcmp.eq.s32.totalorder %v540, %v656
    %vm803 = vcmp.eq.s32.totalorder %v540, %v670
    %vm804 = vcmp.eq.s32.totalorder %v540, %v684
    %vm805 = vcmp.eq.s32.totalorder %v540, %v698
    %vm806 = vcmp.eq.s32.totalorder %v540, %v712
    %vm807 = vcmp.eq.s32.totalorder %v540, %v726
    %vm808 = vcmp.eq.s32.totalorder %v540, %v740
    %vm809 = vcmp.eq.s32.totalorder %v540, %v754
    %vm810 = vcmp.eq.s32.totalorder %v540, %v768
    %vm811 = vcmp.eq.s32.totalorder %v540, %v782
    %vm812 = vcmp.eq.s32.totalorder %v540, %v796
    %v813 = vsel %vm797, 1, 0
    %v814 = vsel %vm798, 1, 0
    %v815 = vsel %vm799, 1, 0
    %v816 = vsel %vm800, 1, 0
    %v817 = vsel %vm801, 1, 0
    %v818 = vsel %vm802, 1, 0
    %v819 = vsel %vm803, 1, 0
    %v820 = vsel %vm804, 1, 0
    %v821 = vsel %vm805, 1, 0
    %v822 = vsel %vm806, 1, 0
    %v823 = vsel %vm807, 1, 0
    %v824 = vsel %vm808, 1, 0
    %v825 = vsel %vm809, 1, 0
    %v826 = vsel %vm810, 1, 0
    %v827 = vsel %vm811, 1, 0
    %v828 = vsel %vm812, 1, 0
    %v829 = vcvt.s32.f32 %v813
    %v830 = vcvt.s32.f32 %v814
    %v831 = vcvt.s32.f32 %v815
    %v832 = vcvt.s32.f32 %v816
    %v833 = vcvt.s32.f32 %v817
    %v834 = vcvt.s32.f32 %v818
    %v835 = vcvt.s32.f32 %v819
    %v836 = vcvt.s32.f32 %v820
    %v837 = vcvt.s32.f32 %v821
    %v838 = vcvt.s32.f32 %v822
    %v839 = vcvt.s32.f32 %v823
    %v840 = vcvt.s32.f32 %v824
    %v841 = vcvt.s32.f32 %v825
    %v842 = vcvt.s32.f32 %v826
    %v843 = vcvt.s32.f32 %v827
    %v844 = vcvt.s32.f32 %v828
    %v845 = vpack.c.bf16 %v830, %v829
    %v846 = vpack.c.bf16 %v832, %v831
    %v847 = vpack.c.bf16 %v834, %v833
    %v848 = vpack.c.bf16 %v836, %v835
    %v849 = vpack.c.bf16 %v838, %v837
    %v850 = vpack.c.bf16 %v840, %v839
    %v851 = vpack.c.bf16 %v842, %v841
    %v852 = vpack.c.bf16 %v844, %v843
    %v853 = vld [vmem:[%s7] sm:$0xf]
    %v854 = vld [vmem:[%s7 + $0x4] sm:$0xf]
    %v855 = vld [vmem:[%s7 + $0x8] sm:$0xf]
    %v856 = vld [vmem:[%s7 + $0xc] sm:$0xf]
    %v857 = vld [vmem:[%s7 + $0x10] sm:$0xf]
    %v858 = vld [vmem:[%s7 + $0x14] sm:$0xf]
    %v859 = vld [vmem:[%s7 + $0x18] sm:$0xf]
    %v860 = vld [vmem:[%s7 + $0x1c] sm:$0xf]
    %v861 = vld [vmem:[%s7 + $0x20] sm:$0xf]
    %v862 = vld [vmem:[%s7 + $0x24] sm:$0xf]
    %v863 = vld [vmem:[%s7 + $0x28] sm:$0xf]
    %v864 = vld [vmem:[%s7 + $0x2c] sm:$0xf]
    %v865 = vld [vmem:[%s7 + $0x30] sm:$0xf]
    %v866 = vld [vmem:[%s7 + $0x34] sm:$0xf]
    %v867 = vld [vmem:[%s7 + $0x38] sm:$0xf]
    %v868 = vld [vmem:[%s7 + $0x3c] sm:$0xf]
    %v869 = vld [vmem:[%s8] sm:$0x1]
    %v871 = vperm.slane %v869, 0
    %v889 = vunpack.c.l.b16 %v853
    %v890 = vunpack.c.l.b16 %v854
    %v891 = vunpack.c.l.b16 %v855
    %v892 = vunpack.c.l.b16 %v856
    %v893 = vunpack.c.l.b16 %v857
    %v894 = vunpack.c.l.b16 %v858
    %v895 = vunpack.c.l.b16 %v859
    %v896 = vunpack.c.l.b16 %v860
    %v897 = vunpack.c.l.b16 %v861
    %v898 = vunpack.c.l.b16 %v862
    %v899 = vunpack.c.l.b16 %v863
    %v900 = vunpack.c.l.b16 %v864
    %v901 = vunpack.c.l.b16 %v865
    %v902 = vunpack.c.l.b16 %v866
    %v903 = vunpack.c.l.b16 %v867
    %v904 = vunpack.c.l.b16 %v868
    %v905 = vpack.c.b16 %v890, %v889
    %v906 = vpack.c.b16 %v892, %v891
    %v907 = vpack.c.b16 %v894, %v893
    %v908 = vpack.c.b16 %v896, %v895
    %v909 = vpack.c.b16 %v898, %v897
    %v910 = vpack.c.b16 %v900, %v899
    %v911 = vpack.c.b16 %v902, %v901
    %v912 = vpack.c.b16 %v904, %v903
    %921 = vmatpush.bf16.msra.mxu0 %v912
    %922 = vmatpush.bf16.msra.mxu0 %v911
    %923 = vmatpush.bf16.msra.mxu0 %v910
    %924 = vmatpush.bf16.msra.mxu0 %v909
    %925 = vmatpush.bf16.msra.mxu0 %v908
    %926 = vmatpush.bf16.msra.mxu0 %v907
    %927 = vmatpush.bf16.msra.mxu0 %v906
    %928 = vmatpush.bf16.msra.mxu0 %v905
    %929 = vmatmul.bf16.gmra.mxu0 %v845
    %v930 = vpop.f32.mrf.mxu0
    %v931 = vadd.f32 %v871, %v930
    %v932 = vpop.f32.mrf.mxu0
    %v933 = vadd.f32 %v871, %v932
    %934 = vmatmul.bf16.gmra.mxu0 %v846
    %v935 = vpop.f32.mrf.mxu0
    %v936 = vadd.f32 %v871, %v935
    %v937 = vpop.f32.mrf.mxu0
    %v938 = vadd.f32 %v871, %v937
    %939 = vmatmul.bf16.gmra.mxu0 %v847
    %v940 = vpop.f32.mrf.mxu0
    %v941 = vadd.f32 %v871, %v940
    %v942 = vpop.f32.mrf.mxu0
    %v943 = vadd.f32 %v871, %v942
    %944 = vmatmul.bf16.gmra.mxu0 %v848
    %v945 = vpop.f32.mrf.mxu0
    %v946 = vadd.f32 %v871, %v945
    %v947 = vpop.f32.mrf.mxu0
    %v948 = vadd.f32 %v871, %v947
    %949 = vmatmul.bf16.gmra.mxu0 %v849
    %v950 = vpop.f32.mrf.mxu0
    %v951 = vadd.f32 %v871, %v950
    %v952 = vpop.f32.mrf.mxu0
    %v953 = vadd.f32 %v871, %v952
    %954 = vmatmul.bf16.gmra.mxu0 %v850
    %v955 = vpop.f32.mrf.mxu0
    %v956 = vadd.f32 %v871, %v955
    %v957 = vpop.f32.mrf.mxu0
    %v958 = vadd.f32 %v871, %v957
    %959 = vmatmul.bf16.gmra.mxu0 %v851
    %v960 = vpop.f32.mrf.mxu0
    %v961 = vadd.f32 %v871, %v960
    %v962 = vpop.f32.mrf.mxu0
    %v963 = vadd.f32 %v871, %v962
    %964 = vmatmul.bf16.gmra.mxu0 %v852
    %v965 = vpop.f32.mrf.mxu0
    %v966 = vadd.f32 %v871, %v965
    %v967 = vpop.f32.mrf.mxu0
    %v968 = vadd.f32 %v871, %v967
    %969 = vdwg.mxu0
    %vm970 = vcmask 130048
    %971 = vst.msk [vmem:[%s9] sm:$0xff] %vm970, %v931
    %972 = vst.msk [vmem:[%s9 + $0x8] sm:$0xff] %vm970, %v933
    %973 = vst.msk [vmem:[%s9 + $0x10] sm:$0xff] %vm970, %v936
    %974 = vst.msk [vmem:[%s9 + $0x18] sm:$0xff] %vm970, %v938
    %975 = vst.msk [vmem:[%s9 + $0x20] sm:$0xff] %vm970, %v941
    %976 = vst.msk [vmem:[%s9 + $0x28] sm:$0xff] %vm970, %v943
    %977 = vst.msk [vmem:[%s9 + $0x30] sm:$0xff] %vm970, %v946
    %978 = vst.msk [vmem:[%s9 + $0x38] sm:$0xff] %vm970, %v948
    %979 = vst.msk [vmem:[%s9 + $0x40] sm:$0xff] %vm970, %v951
    %980 = vst.msk [vmem:[%s9 + $0x48] sm:$0xff] %vm970, %v953
    %981 = vst.msk [vmem:[%s9 + $0x50] sm:$0xff] %vm970, %v956
    %982 = vst.msk [vmem:[%s9 + $0x58] sm:$0xff] %vm970, %v958
    %983 = vst.msk [vmem:[%s9 + $0x60] sm:$0xff] %vm970, %v961
    %984 = vst.msk [vmem:[%s9 + $0x68] sm:$0xff] %vm970, %v963
    %985 = vst.msk [vmem:[%s9 + $0x70] sm:$0xff] %vm970, %v966
    %986 = vst.msk [vmem:[%s9 + $0x78] sm:$0xff] %vm970, %v968
    %987 = vst [vmem:[%s10] sm:$0xff] %v829
    %988 = vst [vmem:[%s10 + $0x8] sm:$0xff] %v830
    %989 = vst [vmem:[%s10 + $0x10] sm:$0xff] %v831
    %990 = vst [vmem:[%s10 + $0x18] sm:$0xff] %v832
    %991 = vst [vmem:[%s10 + $0x20] sm:$0xff] %v833
    %992 = vst [vmem:[%s10 + $0x28] sm:$0xff] %v834
    %993 = vst [vmem:[%s10 + $0x30] sm:$0xff] %v835
    %994 = vst [vmem:[%s10 + $0x38] sm:$0xff] %v836
    %995 = vst [vmem:[%s10 + $0x40] sm:$0xff] %v837
    %996 = vst [vmem:[%s10 + $0x48] sm:$0xff] %v838
    %997 = vst [vmem:[%s10 + $0x50] sm:$0xff] %v839
    %998 = vst [vmem:[%s10 + $0x58] sm:$0xff] %v840
    %999 = vst [vmem:[%s10 + $0x60] sm:$0xff] %v841
    %1000 = vst [vmem:[%s10 + $0x68] sm:$0xff] %v842
    %1001 = vst [vmem:[%s10 + $0x70] sm:$0xff] %v843
    %1002 = vst [vmem:[%s10 + $0x78] sm:$0xff] %v844
    %vm1003 = vcmask 7168
    %1004 = vst.msk [vmem:[%s11] sm:$0xff] %vm1003, %v586
    %1005 = vst.msk [vmem:[%s11 + $0x8] sm:$0xff] %vm1003, %v600
    %1006 = vst.msk [vmem:[%s11 + $0x10] sm:$0xff] %vm1003, %v614
    %1007 = vst.msk [vmem:[%s11 + $0x18] sm:$0xff] %vm1003, %v628
    %1008 = vst.msk [vmem:[%s11 + $0x20] sm:$0xff] %vm1003, %v642
    %1009 = vst.msk [vmem:[%s11 + $0x28] sm:$0xff] %vm1003, %v656
    %1010 = vst.msk [vmem:[%s11 + $0x30] sm:$0xff] %vm1003, %v670
    %1011 = vst.msk [vmem:[%s11 + $0x38] sm:$0xff] %vm1003, %v684
    %1012 = vst.msk [vmem:[%s11 + $0x40] sm:$0xff] %vm1003, %v698
    %1013 = vst.msk [vmem:[%s11 + $0x48] sm:$0xff] %vm1003, %v712
    %1014 = vst.msk [vmem:[%s11 + $0x50] sm:$0xff] %vm1003, %v726
    %1015 = vst.msk [vmem:[%s11 + $0x58] sm:$0xff] %vm1003, %v740
    %1016 = vst.msk [vmem:[%s11 + $0x60] sm:$0xff] %vm1003, %v754
    %1017 = vst.msk [vmem:[%s11 + $0x68] sm:$0xff] %vm1003, %v768
    %1018 = vst.msk [vmem:[%s11 + $0x70] sm:$0xff] %vm1003, %v782
    %1019 = vst.msk [vmem:[%s11 + $0x78] sm:$0xff] %vm1003, %v796
    %v1020 = vld [vmem:[#allocation2] sm:$0x1]
    %v1021 = vadd.f32 %v829, %v830
    %v1022 = vadd.f32 %v1021, %v831
    %v1023 = vadd.f32 %v1022, %v832
    %v1024 = vadd.f32 %v1023, %v833
    %v1025 = vadd.f32 %v1024, %v834
    %v1026 = vadd.f32 %v1025, %v835
    %v1027 = vadd.f32 %v1026, %v836
    %v1028 = vadd.f32 %v1027, %v837
    %v1029 = vadd.f32 %v1028, %v838
    %v1030 = vadd.f32 %v1029, %v839
    %v1031 = vadd.f32 %v1030, %v840
    %v1032 = vadd.f32 %v1031, %v841
    %v1033 = vadd.f32 %v1032, %v842
    %v1034 = vadd.f32 %v1033, %v843
    %v1035 = vadd.f32 %v1034, %v844
    %v1036 = vrot.slane %v1035, 4
    %v1037 = vadd.f32 %v1035, %v1036
    %v1038 = vrot.slane %v1037, 2
    %v1039 = vadd.f32 %v1037, %v1038
    %v1040 = vrot.slane %v1039, 1
    %v1041 = vadd.f32 %v1039, %v1040
    %v1042 = vadd.f32 %v1020, %v1041
    %1043 = vst [vmem:[#allocation2] sm:$0x1] %v1042
    // Predicated region
    $region42: #{vqwae_forward.2} parent=1 // pred_check
      %p1044 = pneg %p38
    $region43: #{vqwae_forward.2} parent=1 // pred_check_branch
      %1046 = sbr.rel (%p1044) target = $region45
    $region44: #{vqwae_forward.2} parent=1 // pred_region
      %v1047 = vld [vmem:[#allocation2] sm:$0x1]
      %v1048 = vmul.f32 %v1047, 0.0078125
      %v1049 = vadd.f32 %v1048, 1e-10
      %v1050 = vlog2.pop %v1049
      %v1051 = vmul.f32 %v1050, 0.6931472
      %v1052 = vmul.f32 %v1048, %v1051
      %vm1053 = vcmask 1040384
      %v1054 = vsel %vm1053, %v1052, 0.0
      %1055 = vadd.xlane.f32.xlu0 %v1054
      %v1056 = vpop.xlane.xlu0 %1055
      %v1057 = vrot.slane %v1056, 4
      %v1058 = vadd.f32 %v1056, %v1057
      %v1059 = vrot.slane %v1058, 2
      %v1060 = vadd.f32 %v1058, %v1059
      %v1061 = vrot.slane %v1060, 1
      %v1062 = vadd.f32 %v1060, %v1061
      %s1063 = vtos %v1062
      %v1064 = vstv %s1063
      %v1065 = vsub.f32 0.0, %v1064
      %v1066 = vmul.f32 %v1065, 1.442695
      %v1067 = vpow.pop %v1066
      %vm1068 = vcmask 0
      %1069 = vst.msk [vmem:[#allocation3] sm:$0x1] %vm1068, %v1067
    $region45: #{vqwae_forward.2} parent=1 // pred_fallthru
      _
    // Predicated region
    $region46: #{vqwae_forward.2} parent=1 // pred_check
      _
    $region47: #{vqwae_forward.2} parent=1 // pred_check_branch
      %1071 = sbr.rel (0) target = $region49
    $region48: #{vqwae_forward.2} parent=1 // pred_region
      _
    $region49: #{vqwae_forward.2} parent=1 // pred_fallthru
      _
    // Predicated region
    $region50: #{vqwae_forward.2} parent=1 // pred_check
      _
    $region51: #{vqwae_forward.2} parent=1 // pred_check_branch
      %1073 = sbr.rel (0) target = $region53
    $region52: #{vqwae_forward.2} parent=1 // pred_region
      _
    $region53: #{vqwae_forward.2} parent=1 // pred_fallthru
      _
    // Predicated region
    $region54: #{vqwae_forward.2} parent=1 // pred_check
      _
    $region55: #{vqwae_forward.2} parent=1 // pred_check_branch
      %1075 = sbr.rel (0) target = $region57
    $region56: #{vqwae_forward.2} parent=1 // pred_region
      _
    $region57: #{vqwae_forward.2} parent=1 // pred_fallthru
      _
    // Predicated region
    $region58: #{vqwae_forward.2} parent=1 // pred_check
      _
    $region59: #{vqwae_forward.2} parent=1 // pred_check_branch
      %1077 = sbr.rel (0) target = $region61
    $region60: #{vqwae_forward.2} parent=1 // pred_region
      %1079 = vsyncadd [#allocation4], 0
      %s1081 = sshll.u32 [#allocation3], 4
      %s1082 = int_to_ptr.vmem [resolvable:$true] %s1081
      %s1083 = sshll.u32 %s12, 4
      %s1084 = int_to_ptr.hbm [resolvable:$true] %s1083
      %1086 = dma.vmem_to_hbm [thread:$0]  %s1082, 16, %s1084, [#allocation4]
    $region61: #{vqwae_forward.2} parent=1 // pred_fallthru
      _
    // Predicated region
    $region62: #{vqwae_forward.2} parent=1 // pred_check
      _
    $region63: #{vqwae_forward.2} parent=1 // pred_check_branch
      %1088 = sbr.rel (0) target = $region65
    $region64: #{vqwae_forward.2} parent=1 // pred_region
      _
    $region65: #{vqwae_forward.2} parent=1 // pred_fallthru
      _
    // Predicated region
    $region66: #{vqwae_forward.2} parent=1 // pred_check
      _
    $region67: #{vqwae_forward.2} parent=1 // pred_check_branch
      %1090 = sbr.rel (0) target = $region69
    $region68: #{vqwae_forward.2} parent=1 // pred_region
      _
    $region69: #{vqwae_forward.2} parent=1 // pred_fallthru
      _
    // Predicated region
    $region70: #{vqwae_forward.2} parent=1 // pred_check
      _
    $region71: #{vqwae_forward.2} parent=1 // pred_check_branch
      %1092 = sbr.rel (0) target = $region73
    $region72: #{vqwae_forward.2} parent=1 // pred_region
      _
    $region73: #{vqwae_forward.2} parent=1 // pred_fallthru
      _
    // Predicated region
    $region74: #{vqwae_forward.2} parent=1 // pred_check
      _
    $region75: #{vqwae_forward.2} parent=1 // pred_check_branch
      %1094 = sbr.rel (0) target = $region77
    $region76: #{vqwae_forward.2} parent=1 // pred_region
      %1096 = dma.done [#allocation4], 16
    $region77: #{vqwae_forward.2} parent=1 // pred_fallthru
      _
    %1097 = vsyncpa [#allocation4], 1

</llo_original>
